<compile_context>
chip_gen: v5e
topology: v5e:2x2
jax: 0.10.0
libtpu: 0.0.40
codegen_flags: <defaults>
</compile_context>

<pallas_src>
import jax
import jax.numpy as jnp
from jax.experimental import pallas as pl
from jax.experimental.pallas import tpu as pltpu

EPS = 1e-5
_VMEM_LIMIT = 32 * 1024 * 1024          # explicit scoped-VMEM budget (safe on v5e/v6e/v7x)
_PASS_A_BYTES_BUDGET = 6 * 1024 * 1024  # per-grid-step slab + acc budget for pass A
_PASS_B_BYTES_BUDGET = 4 * 1024 * 1024  # per-grid-step tile budget for pass B


# ------------------------------------------------------------------------------ tiling helpers
def _divisors_desc(n):
    return [d for d in range(n, 0, -1) if n % d == 0]


def _pick_chunk_rows(H, W, Cin, Cout):
    """Output rows per pass-A grid step.  Whole image if it fits the budget, else the largest
    divisor of H whose chunk width TH*(W+2) is 128-lane aligned (required for chunked out blocks)."""
    Wp = W + 2

    def step_bytes(th):
        slab = Cin * (th + 3) * Wp * 2           # bf16 haloed input chunk
        out = Cout * th * Wp * (2 + 4)           # bf16 y block + f32 accumulator value
        return 2 * slab + 2 * out                # double-buffered

    if step_bytes(H) <= _PASS_A_BYTES_BUDGET:
        return H
    for th in _divisors_desc(H):
        if th < H and (th * Wp) % 128 == 0 and step_bytes(th) <= _PASS_A_BYTES_BUDGET:
            return th
    # TODO(synk): no 128-lane-aligned divisor of H fits the budget; fall back to whole image
    # (only hit for pathological H/W -- would need halo'd manual DMA tiling instead).
    return H


def _pick_row_tile(NR, SW, in_bytes):
    """Pass-B row tile: largest divisor of NR that is a multiple of 8 (or NR itself) within the
    VMEM budget; bounded fallback = smallest legal divisor (never an unbounded whole-array tile)."""
    legal = [d for d in _divisors_desc(NR) if d % 8 == 0 or d == NR]
    for d in legal:
        if d * SW * (in_bytes + 4) * 2 <= _PASS_B_BYTES_BUDGET:
            return d
    return legal[-1]


# ------------------------------------------------------------------- pass A: conv + statistics
def _make_conv_stats_kernel(Wp, Cin, Cout, TH):
    Lc = TH * Wp
    taps = [(kh, kw) for kh in range(3) for kw in range(3)]

    def kernel(xc_ref, w_ref, mask_ref, y_ref, s_ref, ss_ref):
        # xc_ref  : (1, 1, Cin, Pc)  bf16  one haloed row-chunk, channel-major, rows flattened
        # w_ref   : (9, Cout, Cin)   bf16  3x3 weights, tap-major
        # mask_ref: (1, Lc)          f32   1.0 on valid columns (w' < W), 0.0 on the 2 garbage cols
        # y_ref   : (1, Cout, Lc)    bf16  wide pre-BN conv output (lane-dense store)
        # s_ref   : (1, 1, Cout, 1)  f32   per-chunk per-channel sum (valid columns only)
        # ss_ref  : (1, 1, Cout, 1)  f32   per-chunk per-channel sum of squares
        acc = None
        for t, (kh, kw) in enumerate(taps):
            off = kh * Wp + kw                                   # static lane offset of this tap
            slab = xc_ref[0, 0, :, off:off + Lc]                 # (Cin, Lc) bf16 shifted view
            part = jnp.dot(w_ref[t], slab,
                           preferred_element_type=jnp.float32)   # (Cout, Lc) f32 on the MXU
            acc = part if acc is None else acc + part
        # NOTE: no conv bias -- training-mode BatchNorm subtracts the per-channel batch mean
        # right after the conv, so the bias cancels exactly (dead compute removed).
        y_ref[0, :, :] = acc.astype(y_ref.dtype)                 # lane-dense bf16 store
        am = acc * mask_ref[...]                                 # zero out the 2 garbage columns
        s_ref[0, 0, :, :] = jnp.sum(am, axis=1, keepdims=True)
        ss_ref[0, 0, :, :] = jnp.sum(am * acc, axis=1, keepdims=True)

    return kernel


def _conv_stats_call(xc, w_taps, mask, N, n_chunks, Cin, Cout, Wp, TH):
    Lc = TH * Wp
    Pc = xc.shape[-1]
    kernel = _make_conv_stats_kernel(Wp, Cin, Cout, TH)
    return pl.pallas_call(
        kernel,
        out_shape=(jax.ShapeDtypeStruct((N, Cout, n_chunks * Lc), jnp.bfloat16),
                   jax.ShapeDtypeStruct((N, n_chunks, Cout, 1), jnp.float32),
                   jax.ShapeDtypeStruct((N, n_chunks, Cout, 1), jnp.float32)),
        grid=(N, n_chunks),
        in_specs=[
            pl.BlockSpec((1, 1, Cin, Pc), lambda n, c: (n, c, 0, 0)),
            pl.BlockSpec((9, Cout, Cin), lambda n, c: (0, 0, 0)),
            pl.BlockSpec((1, Lc), lambda n, c: (0, 0)),
        ],
        out_specs=(
            pl.BlockSpec((1, Cout, Lc), lambda n, c: (n, 0, c)),
            pl.BlockSpec((1, 1, Cout, 1), lambda n, c: (n, c, 0, 0)),
            pl.BlockSpec((1, 1, Cout, 1), lambda n, c: (n, c, 0, 0)),
        ),
        compiler_params=pltpu.CompilerParams(
            dimension_semantics=("parallel", "parallel"),   # disjoint blocks -> megacore friendly
            vmem_limit_bytes=_VMEM_LIMIT),
    )(xc, w_taps, mask)


# ------------------------------------------------------------------- pass B: batch-norm + ReLU
def _bn_relu_kernel(y_ref, scale_ref, shift_ref, out_ref):
    # y_ref         : (TR, SW) bf16   lane-dense channel-major rows of the wide conv output
    # scale/shift   : (TR, 1)  f32    precomputed per-row (= per-channel) BN coefficients
    # out_ref       : (TR, SW) bf16/f32
    y = y_ref[...].astype(jnp.float32)
    out = y * scale_ref[...] + shift_ref[...]
    out_ref[...] = jnp.maximum(out, 0.0).astype(out_ref.dtype)


def _bn_relu_call(y2, scale_rows, shift_rows, out_dtype):
    NR, SW = y2.shape
    TR = _pick_row_tile(NR, SW, in_bytes=2)
    return pl.pallas_call(
        _bn_relu_kernel,
        out_shape=jax.ShapeDtypeStruct((NR, SW), out_dtype),
        grid=(pl.cdiv(NR, TR),),
        in_specs=[
            pl.BlockSpec((TR, SW), lambda r: (r, 0)),
            pl.BlockSpec((TR, 1), lambda r: (r, 0)),
            pl.BlockSpec((TR, 1), lambda r: (r, 0)),
        ],
        out_specs=pl.BlockSpec((TR, SW), lambda r: (r, 0)),
        compiler_params=pltpu.CompilerParams(
            dimension_semantics=("parallel",),
            vmem_limit_bytes=_VMEM_LIMIT),
    )(y2, scale_rows, shift_rows)


# ---------------------------------------------------------------------------- layer & forward
def _conv_bn_relu_layer(x_nchw, w, gamma, beta, out_dtype):
    N, Cin, H, W = x_nchw.shape
    Cout = w.shape[0]
    Wp = W + 2
    TH = _pick_chunk_rows(H, W, Cin, Cout)
    n_chunks = H // TH
    Lc = TH * Wp
    Pc = (TH + 3) * Wp

    # ---------------- host-side prep (pure XLA glue, cheap relative to the conv) --------------
    # SAME padding; the extra bottom rows give every chunk its 2-row halo plus the tap-slice tail.
    xp = jnp.pad(x_nchw, ((0, 0), (0, 0), (1, 3), (1, 1))).astype(jnp.bfloat16)
    if n_chunks == 1:
        xc = xp[:, :, :TH + 3, :].reshape(N, 1, Cin, Pc)
    else:
        rows = (jnp.arange(n_chunks) * TH)[:, None] + jnp.arange(TH + 3)[None, :]
        xc = xp[:, :, rows, :]                                    # (N, Cin, n_chunks, TH+3, Wp)
        xc = jnp.transpose(xc, (0, 2, 1, 3, 4)).reshape(N, n_chunks, Cin, Pc)
    # (Cout, Cin, 3, 3) -> (9, Cout, Cin), tap-major (kh*3 + kw), bf16 MXU inputs.
    w_taps = jnp.transpose(w, (2, 3, 0, 1)).reshape(9, Cout, Cin).astype(jnp.bfloat16)
    # Column-validity mask for the "wide" (W+2) layout: lane q is valid iff (q mod (W+2)) < W.
    mask = ((jnp.arange(Lc) % Wp) < W).astype(jnp.float32).reshape(1, Lc)

    # ---------------- pass A: tap-wise accumulating matmuls + per-chunk stats -----------------
    y, s_part, ss_part = _conv_stats_call(xc, w_taps, mask, N, n_chunks, Cin, Cout, Wp, TH)

    # ------ fold partials into training-mode BatchNorm scale/shift (tiny XLA reduction) -------
    count = float(N * H * W)
    s_tot = jnp.sum(s_part, axis=(0, 1))[:, 0]                    # (Cout,)
    ss_tot = jnp.sum(ss_part, axis=(0, 1))[:, 0]                  # (Cout,)
    mean = s_tot / count
    var = ss_tot / count - mean * mean                            # biased batch variance
    scale = gamma.astype(jnp.float32) * jax.lax.rsqrt(var + EPS)
    shift = beta.astype(jnp.float32) - mean * scale
    scale_rows = jnp.tile(scale, N).reshape(N * Cout, 1)          # row r = (n, co) -> scale[co]
    shift_rows = jnp.tile(shift, N).reshape(N * Cout, 1)

    # ---------------- pass B: lane-dense y*scale + shift, ReLU (HBM-roofline FMA) -------------
    y2 = y.reshape(N * Cout, n_chunks * Lc)                       # free row-major view
    out = _bn_relu_call(y2, scale_rows, shift_rows, out_dtype)

    # Drop the two garbage columns of the wide layout -> PyTorch-native NCHW (no transposes).
    return out.reshape(N, Cout, H, Wp)[:, :, :, :W]


@jax.jit
def conv_block_forward(x_nchw, params):
    """conv_block forward. x: NCHW float32 in, NCHW float32 out (PyTorch convention)."""
    x = x_nchw
    n_layers = len(params)
    for i, (w, b, gamma, beta) in enumerate(params):
        # Conv bias `b` is intentionally unused: training-mode BatchNorm subtracts the
        # per-channel batch mean immediately after the conv, cancelling the bias exactly.
        del b
        out_dtype = jnp.bfloat16 if i + 1 < n_layers else jnp.float32
        x = _conv_bn_relu_layer(x, w, gamma, beta, out_dtype)
    return x


# -------------------------------------------------------------------------------- reference
def _reference(x_nchw, params):
    """Pure-JAX/XLA reference mirroring the kernel's precision policy (bf16 conv inputs and
    bf16 storage of the pre-BN conv output; statistics and BN math in f32)."""
    x = x_nchw
    for (w, b, g, be) in params:
        xr = x.astype(jnp.bfloat16).astype(jnp.float32)
        wr = w.astype(jnp.bfloat16).astype(jnp.float32)
        y = jax.lax.conv_general_dilated(
            xr, wr, window_strides=(1, 1), padding=((1, 1), (1, 1)),
            dimension_numbers=("NCHW", "OIHW", "NCHW"))
        y = y + b.reshape(1, -1, 1, 1)       # present in the module; cancelled exactly by BN below
        mean = jnp.mean(y, axis=(0, 2, 3), keepdims=True)
        var = jnp.mean((y - mean) ** 2, axis=(0, 2, 3), keepdims=True)
        yq = y.astype(jnp.bfloat16).astype(jnp.float32)   # mirror bf16 intermediate storage
        y = (yq - mean) * jax.lax.rsqrt(var + EPS) * g.reshape(1, -1, 1, 1) + be.reshape(1, -1, 1, 1)
        x = jnp.maximum(y, 0.0)
    return x


def init_params(key, in_ch, out_ch):
    """Deterministic parameters matching conv_block(in_ch, out_ch): two (conv, BN) stages."""
    k1, k2 = jax.random.split(key)

    def conv_init(k, cin, cout):
        bound = 1.0 / (cin * 9) ** 0.5
        kw_, kb_ = jax.random.split(k)
        w = jax.random.uniform(kw_, (cout, cin, 3, 3), jnp.float32, -bound, bound)
        b = jax.random.uniform(kb_, (cout,), jnp.float32, -bound, bound)
        return w, b

    def layer(k, cin, cout):
        w, b = conv_init(k, cin, cout)
        return (w, b, jnp.ones((cout,), jnp.float32), jnp.zeros((cout,), jnp.float32))

    return (layer(k1, in_ch, out_ch), layer(k2, out_ch, out_ch))


if __name__ == "__main__":
    key = jax.random.PRNGKey(0)
    kx, kp = jax.random.split(key)

    in_ch, out_ch = 4, 8
    N, H, W = 2, 16, 16

    x = jax.random.normal(kx, (N, in_ch, H, W), jnp.float32)      # NCHW like PyTorch
    params = init_params(kp, in_ch, out_ch)

    y = conv_block_forward(x, params)
    jax.block_until_ready(y)

    assert y.shape == (N, out_ch, H, W), y.shape
    y_ref = _reference(x, params)
    max_err = float(jnp.max(jnp.abs(y - y_ref)))
    # bf16 matmul inputs + bf16 intermediate storage => loosened tolerance vs the f32-math path.
    assert jnp.allclose(y, y_ref, rtol=2e-2, atol=2e-2), f"mismatch vs reference (max|err|={max_err})"

    # TODO(synk): BatchNorm running_mean/running_var buffer updates (a training-time side effect
    # of the PyTorch module) are not materialized; the forward output uses batch statistics.

    print("KERNEL_OK")
</pallas_src>

<mosaic_0001>
module attributes {stable_mosaic.version = 11 : i64} {
  func.func @_bn_relu_kernel(%arg0: i32, %arg1: memref<16x288xbf16, #tpu.memory_space<vmem>>, %arg2: memref<16x1xf32, #tpu.memory_space<vmem>>, %arg3: memref<16x1xf32, #tpu.memory_space<vmem>>, %arg4: memref<16x288xbf16, #tpu.memory_space<vmem>>) attributes {dimension_semantics = [#tpu.dimension_semantics<parallel>], iteration_bounds = array<i64: 1>, scalar_prefetch = 0 : i64, scratch_operands = 0 : i64, tpu.core_type = #tpu.core_type<tc>, window_params = [{transform_indices = @transform_0, window_bounds = array<i64: 16, 288>}, {transform_indices = @transform_1, window_bounds = array<i64: 16, 1>}, {transform_indices = @transform_2, window_bounds = array<i64: 16, 1>}, {transform_indices = @transform_3, window_bounds = array<i64: 16, 288>}]} {
    %c0 = arith.constant 0 : index
    %c0_0 = arith.constant 0 : index
    %0 = vector.load %arg1[%c0, %c0_0] : memref<16x288xbf16, #tpu.memory_space<vmem>>, vector<16x288xbf16>
    %1 = arith.extf %0 : vector<16x288xbf16> to vector<16x288xf32>
    %c0_1 = arith.constant 0 : index
    %c0_2 = arith.constant 0 : index
    %2 = vector.load %arg2[%c0_1, %c0_2] : memref<16x1xf32, #tpu.memory_space<vmem>>, vector<16x1xf32>
    %3 = vector.broadcast %2 : vector<16x1xf32> to vector<16x288xf32>
    %4 = arith.mulf %1, %3 : vector<16x288xf32>
    %c0_3 = arith.constant 0 : index
    %c0_4 = arith.constant 0 : index
    %5 = vector.load %arg3[%c0_3, %c0_4] : memref<16x1xf32, #tpu.memory_space<vmem>>, vector<16x1xf32>
    %6 = vector.broadcast %5 : vector<16x1xf32> to vector<16x288xf32>
    %7 = arith.addf %4, %6 : vector<16x288xf32>
    %cst = arith.constant 0.000000e+00 : f32
    %8 = vector.broadcast %cst : f32 to vector<16x288xf32>
    %9 = arith.maximumf %7, %8 : vector<16x288xf32>
    %10 = arith.truncf %9 : vector<16x288xf32> to vector<16x288xbf16>
    %c0_5 = arith.constant 0 : index
    %c0_6 = arith.constant 0 : index
    %11 = vector.load %arg4[%c0_5, %c0_6] : memref<16x288xbf16, #tpu.memory_space<vmem>>, vector<16x288xbf16>
    tpu.vector_store %arg4[%c0_5, %c0_6], %10 {strides = array<i32>} : memref<16x288xbf16, #tpu.memory_space<vmem>>, vector<16x288xbf16>,
    return
  }
  func.func @transform_0(%arg0: i32) -> (i32, i32) {
    %c0_i32 = arith.constant 0 : i32
    %c0_i32_0 = arith.constant 0 : i32
    return %arg0, %c0_i32 : i32, i32
  }
  func.func @transform_1(%arg0: i32) -> (i32, i32) {
    %c0_i32 = arith.constant 0 : i32
    %c0_i32_0 = arith.constant 0 : i32
    return %arg0, %c0_i32 : i32, i32
  }
  func.func @transform_2(%arg0: i32) -> (i32, i32) {
    %c0_i32 = arith.constant 0 : i32
    %c0_i32_0 = arith.constant 0 : i32
    return %arg0, %c0_i32 : i32, i32
  }
  func.func @transform_3(%arg0: i32) -> (i32, i32) {
    %c0_i32 = arith.constant 0 : i32
    %c0_i32_0 = arith.constant 0 : i32
    return %arg0, %c0_i32 : i32, i32
  }
}

module attributes {stable_mosaic.version = 11 : i64} {
  func.func @kernel(%arg0: i32, %arg1: i32, %arg2: memref<1x1x4x342xbf16, #tpu.memory_space<vmem>>, %arg3: memref<9x8x4xbf16, #tpu.memory_space<vmem>>, %arg4: memref<1x288xf32, #tpu.memory_space<vmem>>, %arg5: memref<1x8x288xbf16, #tpu.memory_space<vmem>>, %arg6: memref<1x1x8x1xf32, #tpu.memory_space<vmem>>, %arg7: memref<1x1x8x1xf32, #tpu.memory_space<vmem>>) attributes {dimension_semantics = [#tpu.dimension_semantics<parallel>, #tpu.dimension_semantics<parallel>], iteration_bounds = array<i64: 2, 1>, scalar_prefetch = 0 : i64, scratch_operands = 0 : i64, tpu.core_type = #tpu.core_type<tc>, window_params = [{transform_indices = @transform_0, window_bounds = array<i64: 1, 1, 4, 342>}, {pipeline_mode = #tpu.pipeline_mode<synchronous>, transform_indices = @transform_1, window_bounds = array<i64: 9, 8, 4>}, {pipeline_mode = #tpu.pipeline_mode<synchronous>, transform_indices = @transform_2, window_bounds = array<i64: 1, 288>}, {transform_indices = @transform_3, window_bounds = array<i64: 1, 8, 288>}, {transform_indices = @transform_4, window_bounds = array<i64: 1, 1, 8, 1>}, {transform_indices = @transform_5, window_bounds = array<i64: 1, 1, 8, 1>}]} {
    %c0 = arith.constant 0 : index
    %c0_0 = arith.constant 0 : index
    %c0_1 = arith.constant 0 : index
    %c0_2 = arith.constant 0 : index
    %0 = vector.load %arg2[%c0, %c0_0, %c0_1, %c0_2] : memref<1x1x4x342xbf16, #tpu.memory_space<vmem>>, vector<1x1x4x288xbf16>
    %1 = vector.shape_cast %0 : vector<1x1x4x288xbf16> to vector<4x288xbf16>
    %c0_3 = arith.constant 0 : index
    %c0_4 = arith.constant 0 : index
    %c0_5 = arith.constant 0 : index
    %2 = vector.load %arg3[%c0_3, %c0_4, %c0_5] : memref<9x8x4xbf16, #tpu.memory_space<vmem>>, vector<1x8x4xbf16>
    %3 = vector.shape_cast %2 : vector<1x8x4xbf16> to vector<8x4xbf16>
    %cst = arith.constant dense<0.000000e+00> : vector<8x288xf32>
    %4 = tpu.matmul %3, %1, %cst {dimension_numbers = #tpu.dot_dimension_numbers<[1], [0], [0], [1], [0, 0, 1, 1], [], []>} : vector<8x4xbf16>, vector<4x288xbf16>, vector<8x288xf32> -> vector<8x288xf32>
    %c0_6 = arith.constant 0 : index
    %c0_7 = arith.constant 0 : index
    %c0_8 = arith.constant 0 : index
    %c1 = arith.constant 1 : index
    %5 = vector.load %arg2[%c0_6, %c0_7, %c0_8, %c1] : memref<1x1x4x342xbf16, #tpu.memory_space<vmem>>, vector<1x1x4x288xbf16>
    %6 = vector.shape_cast %5 : vector<1x1x4x288xbf16> to vector<4x288xbf16>
    %c1_9 = arith.constant 1 : index
    %c0_10 = arith.constant 0 : index
    %c0_11 = arith.constant 0 : index
    %7 = vector.load %arg3[%c1_9, %c0_10, %c0_11] : memref<9x8x4xbf16, #tpu.memory_space<vmem>>, vector<1x8x4xbf16>
    %8 = vector.shape_cast %7 : vector<1x8x4xbf16> to vector<8x4xbf16>
    %cst_12 = arith.constant dense<0.000000e+00> : vector<8x288xf32>
    %9 = tpu.matmul %8, %6, %cst_12 {dimension_numbers = #tpu.dot_dimension_numbers<[1], [0], [0], [1], [0, 0, 1, 1], [], []>} : vector<8x4xbf16>, vector<4x288xbf16>, vector<8x288xf32> -> vector<8x288xf32>
    %10 = arith.addf %4, %9 : vector<8x288xf32>
    %c0_13 = arith.constant 0 : index
    %c0_14 = arith.constant 0 : index
    %c0_15 = arith.constant 0 : index
    %c2 = arith.constant 2 : index
    %11 = vector.load %arg2[%c0_13, %c0_14, %c0_15, %c2] : memref<1x1x4x342xbf16, #tpu.memory_space<vmem>>, vector<1x1x4x288xbf16>
    %12 = vector.shape_cast %11 : vector<1x1x4x288xbf16> to vector<4x288xbf16>
    %c2_16 = arith.constant 2 : index
    %c0_17 = arith.constant 0 : index
    %c0_18 = arith.constant 0 : index
    %13 = vector.load %arg3[%c2_16, %c0_17, %c0_18] : memref<9x8x4xbf16, #tpu.memory_space<vmem>>, vector<1x8x4xbf16>
    %14 = vector.shape_cast %13 : vector<1x8x4xbf16> to vector<8x4xbf16>
    %cst_19 = arith.constant dense<0.000000e+00> : vector<8x288xf32>
    %15 = tpu.matmul %14, %12, %cst_19 {dimension_numbers = #tpu.dot_dimension_numbers<[1], [0], [0], [1], [0, 0, 1, 1], [], []>} : vector<8x4xbf16>, vector<4x288xbf16>, vector<8x288xf32> -> vector<8x288xf32>
    %16 = arith.addf %10, %15 : vector<8x288xf32>
    %c0_20 = arith.constant 0 : index
    %c0_21 = arith.constant 0 : index
    %c0_22 = arith.constant 0 : index
    %c18 = arith.constant 18 : index
    %17 = vector.load %arg2[%c0_20, %c0_21, %c0_22, %c18] : memref<1x1x4x342xbf16, #tpu.memory_space<vmem>>, vector<1x1x4x288xbf16>
    %18 = vector.shape_cast %17 : vector<1x1x4x288xbf16> to vector<4x288xbf16>
    %c3 = arith.constant 3 : index
    %c0_23 = arith.constant 0 : index
    %c0_24 = arith.constant 0 : index
    %19 = vector.load %arg3[%c3, %c0_23, %c0_24] : memref<9x8x4xbf16, #tpu.memory_space<vmem>>, vector<1x8x4xbf16>
    %20 = vector.shape_cast %19 : vector<1x8x4xbf16> to vector<8x4xbf16>
    %cst_25 = arith.constant dense<0.000000e+00> : vector<8x288xf32>
    %21 = tpu.matmul %20, %18, %cst_25 {dimension_numbers = #tpu.dot_dimension_numbers<[1], [0], [0], [1], [0, 0, 1, 1], [], []>} : vector<8x4xbf16>, vector<4x288xbf16>, vector<8x288xf32> -> vector<8x288xf32>
    %22 = arith.addf %16, %21 : vector<8x288xf32>
    %c0_26 = arith.constant 0 : index
    %c0_27 = arith.constant 0 : index
    %c0_28 = arith.constant 0 : index
    %c19 = arith.constant 19 : index
    %23 = vector.load %arg2[%c0_26, %c0_27, %c0_28, %c19] : memref<1x1x4x342xbf16, #tpu.memory_space<vmem>>, vector<1x1x4x288xbf16>
    %24 = vector.shape_cast %23 : vector<1x1x4x288xbf16> to vector<4x288xbf16>
    %c4 = arith.constant 4 : index
    %c0_29 = arith.constant 0 : index
    %c0_30 = arith.constant 0 : index
    %25 = vector.load %arg3[%c4, %c0_29, %c0_30] : memref<9x8x4xbf16, #tpu.memory_space<vmem>>, vector<1x8x4xbf16>
    %26 = vector.shape_cast %25 : vector<1x8x4xbf16> to vector<8x4xbf16>
    %cst_31 = arith.constant dense<0.000000e+00> : vector<8x288xf32>
    %27 = tpu.matmul %26, %24, %cst_31 {dimension_numbers = #tpu.dot_dimension_numbers<[1], [0], [0], [1], [0, 0, 1, 1], [], []>} : vector<8x4xbf16>, vector<4x288xbf16>, vector<8x288xf32> -> vector<8x288xf32>
    %28 = arith.addf %22, %27 : vector<8x288xf32>
    %c0_32 = arith.constant 0 : index
    %c0_33 = arith.constant 0 : index
    %c0_34 = arith.constant 0 : index
    %c20 = arith.constant 20 : index
    %29 = vector.load %arg2[%c0_32, %c0_33, %c0_34, %c20] : memref<1x1x4x342xbf16, #tpu.memory_space<vmem>>, vector<1x1x4x288xbf16>
    %30 = vector.shape_cast %29 : vector<1x1x4x288xbf16> to vector<4x288xbf16>
    %c5 = arith.constant 5 : index
    %c0_35 = arith.constant 0 : index
    %c0_36 = arith.constant 0 : index
    %31 = vector.load %arg3[%c5, %c0_35, %c0_36] : memref<9x8x4xbf16, #tpu.memory_space<vmem>>, vector<1x8x4xbf16>
    %32 = vector.shape_cast %31 : vector<1x8x4xbf16> to vector<8x4xbf16>
    %cst_37 = arith.constant dense<0.000000e+00> : vector<8x288xf32>
    %33 = tpu.matmul %32, %30, %cst_37 {dimension_numbers = #tpu.dot_dimension_numbers<[1], [0], [0], [1], [0, 0, 1, 1], [], []>} : vector<8x4xbf16>, vector<4x288xbf16>, vector<8x288xf32> -> vector<8x288xf32>
    %34 = arith.addf %28, %33 : vector<8x288xf32>
    %c0_38 = arith.constant 0 : index
    %c0_39 = arith.constant 0 : index
    %c0_40 = arith.constant 0 : index
    %c36 = arith.constant 36 : index
    %35 = vector.load %arg2[%c0_38, %c0_39, %c0_40, %c36] : memref<1x1x4x342xbf16, #tpu.memory_space<vmem>>, vector<1x1x4x288xbf16>
    %36 = vector.shape_cast %35 : vector<1x1x4x288xbf16> to vector<4x288xbf16>
    %c6 = arith.constant 6 : index
    %c0_41 = arith.constant 0 : index
    %c0_42 = arith.constant 0 : index
    %37 = vector.load %arg3[%c6, %c0_41, %c0_42] : memref<9x8x4xbf16, #tpu.memory_space<vmem>>, vector<1x8x4xbf16>
    %38 = vector.shape_cast %37 : vector<1x8x4xbf16> to vector<8x4xbf16>
    %cst_43 = arith.constant dense<0.000000e+00> : vector<8x288xf32>
    %39 = tpu.matmul %38, %36, %cst_43 {dimension_numbers = #tpu.dot_dimension_numbers<[1], [0], [0], [1], [0, 0, 1, 1], [], []>} : vector<8x4xbf16>, vector<4x288xbf16>, vector<8x288xf32> -> vector<8x288xf32>
    %40 = arith.addf %34, %39 : vector<8x288xf32>
    %c0_44 = arith.constant 0 : index
    %c0_45 = arith.constant 0 : index
    %c0_46 = arith.constant 0 : index
    %c37 = arith.constant 37 : index
    %41 = vector.load %arg2[%c0_44, %c0_45, %c0_46, %c37] : memref<1x1x4x342xbf16, #tpu.memory_space<vmem>>, vector<1x1x4x288xbf16>
    %42 = vector.shape_cast %41 : vector<1x1x4x288xbf16> to vector<4x288xbf16>
    %c7 = arith.constant 7 : index
    %c0_47 = arith.constant 0 : index
    %c0_48 = arith.constant 0 : index
    %43 = vector.load %arg3[%c7, %c0_47, %c0_48] : memref<9x8x4xbf16, #tpu.memory_space<vmem>>, vector<1x8x4xbf16>
    %44 = vector.shape_cast %43 : vector<1x8x4xbf16> to vector<8x4xbf16>
    %cst_49 = arith.constant dense<0.000000e+00> : vector<8x288xf32>
    %45 = tpu.matmul %44, %42, %cst_49 {dimension_numbers = #tpu.dot_dimension_numbers<[1], [0], [0], [1], [0, 0, 1, 1], [], []>} : vector<8x4xbf16>, vector<4x288xbf16>, vector<8x288xf32> -> vector<8x288xf32>
    %46 = arith.addf %40, %45 : vector<8x288xf32>
    %c0_50 = arith.constant 0 : index
    %c0_51 = arith.constant 0 : index
    %c0_52 = arith.constant 0 : index
    %c38 = arith.constant 38 : index
    %47 = vector.load %arg2[%c0_50, %c0_51, %c0_52, %c38] : memref<1x1x4x342xbf16, #tpu.memory_space<vmem>>, vector<1x1x4x288xbf16>
    %48 = vector.shape_cast %47 : vector<1x1x4x288xbf16> to vector<4x288xbf16>
    %c8 = arith.constant 8 : index
    %c0_53 = arith.constant 0 : index
    %c0_54 = arith.constant 0 : index
    %49 = vector.load %arg3[%c8, %c0_53, %c0_54] : memref<9x8x4xbf16, #tpu.memory_space<vmem>>, vector<1x8x4xbf16>
    %50 = vector.shape_cast %49 : vector<1x8x4xbf16> to vector<8x4xbf16>
    %cst_55 = arith.constant dense<0.000000e+00> : vector<8x288xf32>
    %51 = tpu.matmul %50, %48, %cst_55 {dimension_numbers = #tpu.dot_dimension_numbers<[1], [0], [0], [1], [0, 0, 1, 1], [], []>} : vector<8x4xbf16>, vector<4x288xbf16>, vector<8x288xf32> -> vector<8x288xf32>
    %52 = arith.addf %46, %51 : vector<8x288xf32>
    %53 = arith.truncf %52 : vector<8x288xf32> to vector<8x288xbf16>
    %c0_56 = arith.constant 0 : index
    %c0_57 = arith.constant 0 : index
    %c0_58 = arith.constant 0 : index
    %54 = vector.load %arg5[%c0_56, %c0_57, %c0_58] : memref<1x8x288xbf16, #tpu.memory_space<vmem>>, vector<1x8x288xbf16>
    %55 = vector.shape_cast %54 : vector<1x8x288xbf16> to vector<8x288xbf16>
    %56 = vector.shape_cast %53 : vector<8x288xbf16> to vector<1x8x288xbf16>
    tpu.vector_store %arg5[%c0_56, %c0_57, %c0_58], %56 {strides = array<i32>} : memref<1x8x288xbf16, #tpu.memory_space<vmem>>, vector<1x8x288xbf16>,
    %c0_59 = arith.constant 0 : index
    %c0_60 = arith.constant 0 : index
    %57 = vector.load %arg4[%c0_59, %c0_60] : memref<1x288xf32, #tpu.memory_space<vmem>>, vector<1x288xf32>
    %58 = vector.broadcast %57 : vector<1x288xf32> to vector<8x288xf32>
    %59 = arith.mulf %52, %58 : vector<8x288xf32>
    %cst_61 = arith.constant dense<0.000000e+00> : vector<8xf32>
    %60 = vector.multi_reduction <add>, %59, %cst_61 [1] : vector<8x288xf32> to vector<8xf32>
    %61 = vector.shape_cast %60 : vector<8xf32> to vector<8x1xf32>
    %c0_62 = arith.constant 0 : index
    %c0_63 = arith.constant 0 : index
    %c0_64 = arith.constant 0 : index
    %c0_65 = arith.constant 0 : index
    %62 = vector.load %arg6[%c0_62, %c0_63, %c0_64, %c0_65] : memref<1x1x8x1xf32, #tpu.memory_space<vmem>>, vector<1x1x8x1xf32>
    %63 = vector.shape_cast %62 : vector<1x1x8x1xf32> to vector<8x1xf32>
    %64 = vector.shape_cast %61 : vector<8x1xf32> to vector<1x1x8x1xf32>
    tpu.vector_store %arg6[%c0_62, %c0_63, %c0_64, %c0_65], %64 {strides = array<i32>} : memref<1x1x8x1xf32, #tpu.memory_space<vmem>>, vector<1x1x8x1xf32>,
    %65 = arith.mulf %59, %52 : vector<8x288xf32>
    %cst_66 = arith.constant dense<0.000000e+00> : vector<8xf32>
    %66 = vector.multi_reduction <add>, %65, %cst_66 [1] : vector<8x288xf32> to vector<8xf32>
    %67 = vector.shape_cast %66 : vector<8xf32> to vector<8x1xf32>
    %c0_67 = arith.constant 0 : index
    %c0_68 = arith.constant 0 : index
    %c0_69 = arith.constant 0 : index
    %c0_70 = arith.constant 0 : index
    %68 = vector.load %arg7[%c0_67, %c0_68, %c0_69, %c0_70] : memref<1x1x8x1xf32, #tpu.memory_space<vmem>>, vector<1x1x8x1xf32>
    %69 = vector.shape_cast %68 : vector<1x1x8x1xf32> to vector<8x1xf32>
    %70 = vector.shape_cast %67 : vector<8x1xf32> to vector<1x1x8x1xf32>
    tpu.vector_store %arg7[%c0_67, %c0_68, %c0_69, %c0_70], %70 {strides = array<i32>} : memref<1x1x8x1xf32, #tpu.memory_space<vmem>>, vector<1x1x8x1xf32>,
    return
  }
  func.func @transform_0(%arg0: i32, %arg1: i32) -> (i32, i32, i32, i32) {
    %c0_i32 = arith.constant 0 : i32
    %c0_i32_0 = arith.constant 0 : i32
    %c0_i32_1 = arith.constant 0 : i32
    return %arg0, %arg1, %c0_i32, %c0_i32_0 : i32, i32, i32, i32
  }
  func.func @transform_1(%arg0: i32, %arg1: i32) -> (i32, i32, i32) {
    %c0_i32 = arith.constant 0 : i32
    %c0_i32_0 = arith.constant 0 : i32
    %c0_i32_1 = arith.constant 0 : i32
    %c0_i32_2 = arith.constant 0 : i32
    return %c0_i32, %c0_i32_0, %c0_i32_1 : i32, i32, i32
  }
  func.func @transform_2(%arg0: i32, %arg1: i32) -> (i32, i32) {
    %c0_i32 = arith.constant 0 : i32
    %c0_i32_0 = arith.constant 0 : i32
    %c0_i32_1 = arith.constant 0 : i32
    return %c0_i32, %c0_i32_0 : i32, i32
  }
  func.func @transform_3(%arg0: i32, %arg1: i32) -> (i32, i32, i32) {
    %c0_i32 = arith.constant 0 : i32
    %c0_i32_0 = arith.constant 0 : i32
    return %arg0, %c0_i32, %arg1 : i32, i32, i32
  }
  func.func @transform_4(%arg0: i32, %arg1: i32) -> (i32, i32, i32, i32) {
    %c0_i32 = arith.constant 0 : i32
    %c0_i32_0 = arith.constant 0 : i32
    %c0_i32_1 = arith.constant 0 : i32
    return %arg0, %arg1, %c0_i32, %c0_i32_0 : i32, i32, i32, i32
  }
  func.func @transform_5(%arg0: i32, %arg1: i32) -> (i32, i32, i32, i32) {
    %c0_i32 = arith.constant 0 : i32
    %c0_i32_0 = arith.constant 0 : i32
    %c0_i32_1 = arith.constant 0 : i32
    return %arg0, %arg1, %c0_i32, %c0_i32_0 : i32, i32, i32, i32
  }
}

module attributes {stable_mosaic.version = 11 : i64} {
  func.func @kernel(%arg0: i32, %arg1: i32, %arg2: memref<1x1x8x342xbf16, #tpu.memory_space<vmem>>, %arg3: memref<9x8x8xbf16, #tpu.memory_space<vmem>>, %arg4: memref<1x288xf32, #tpu.memory_space<vmem>>, %arg5: memref<1x8x288xbf16, #tpu.memory_space<vmem>>, %arg6: memref<1x1x8x1xf32, #tpu.memory_space<vmem>>, %arg7: memref<1x1x8x1xf32, #tpu.memory_space<vmem>>) attributes {dimension_semantics = [#tpu.dimension_semantics<parallel>, #tpu.dimension_semantics<parallel>], iteration_bounds = array<i64: 2, 1>, scalar_prefetch = 0 : i64, scratch_operands = 0 : i64, tpu.core_type = #tpu.core_type<tc>, window_params = [{transform_indices = @transform_0, window_bounds = array<i64: 1, 1, 8, 342>}, {pipeline_mode = #tpu.pipeline_mode<synchronous>, transform_indices = @transform_1, window_bounds = array<i64: 9, 8, 8>}, {pipeline_mode = #tpu.pipeline_mode<synchronous>, transform_indices = @transform_2, window_bounds = array<i64: 1, 288>}, {transform_indices = @transform_3, window_bounds = array<i64: 1, 8, 288>}, {transform_indices = @transform_4, window_bounds = array<i64: 1, 1, 8, 1>}, {transform_indices = @transform_5, window_bounds = array<i64: 1, 1, 8, 1>}]} {
    %c0 = arith.constant 0 : index
    %c0_0 = arith.constant 0 : index
    %c0_1 = arith.constant 0 : index
    %c0_2 = arith.constant 0 : index
    %0 = vector.load %arg2[%c0, %c0_0, %c0_1, %c0_2] : memref<1x1x8x342xbf16, #tpu.memory_space<vmem>>, vector<1x1x8x288xbf16>
    %1 = vector.shape_cast %0 : vector<1x1x8x288xbf16> to vector<8x288xbf16>
    %c0_3 = arith.constant 0 : index
    %c0_4 = arith.constant 0 : index
    %c0_5 = arith.constant 0 : index
    %2 = vector.load %arg3[%c0_3, %c0_4, %c0_5] : memref<9x8x8xbf16, #tpu.memory_space<vmem>>, vector<1x8x8xbf16>
    %3 = vector.shape_cast %2 : vector<1x8x8xbf16> to vector<8x8xbf16>
    %cst = arith.constant dense<0.000000e+00> : vector<8x288xf32>
    %4 = tpu.matmul %3, %1, %cst {dimension_numbers = #tpu.dot_dimension_numbers<[1], [0], [0], [1], [0, 0, 1, 1], [], []>} : vector<8x8xbf16>, vector<8x288xbf16>, vector<8x288xf32> -> vector<8x288xf32>
    %c0_6 = arith.constant 0 : index
    %c0_7 = arith.constant 0 : index
    %c0_8 = arith.constant 0 : index
    %c1 = arith.constant 1 : index
    %5 = vector.load %arg2[%c0_6, %c0_7, %c0_8, %c1] : memref<1x1x8x342xbf16, #tpu.memory_space<vmem>>, vector<1x1x8x288xbf16>
    %6 = vector.shape_cast %5 : vector<1x1x8x288xbf16> to vector<8x288xbf16>
    %c1_9 = arith.constant 1 : index
    %c0_10 = arith.constant 0 : index
    %c0_11 = arith.constant 0 : index
    %7 = vector.load %arg3[%c1_9, %c0_10, %c0_11] : memref<9x8x8xbf16, #tpu.memory_space<vmem>>, vector<1x8x8xbf16>
    %8 = vector.shape_cast %7 : vector<1x8x8xbf16> to vector<8x8xbf16>
    %cst_12 = arith.constant dense<0.000000e+00> : vector<8x288xf32>
    %9 = tpu.matmul %8, %6, %cst_12 {dimension_numbers = #tpu.dot_dimension_numbers<[1], [0], [0], [1], [0, 0, 1, 1], [], []>} : vector<8x8xbf16>, vector<8x288xbf16>, vector<8x288xf32> -> vector<8x288xf32>
    %10 = arith.addf %4, %9 : vector<8x288xf32>
    %c0_13 = arith.constant 0 : index
    %c0_14 = arith.constant 0 : index
    %c0_15 = arith.constant 0 : index
    %c2 = arith.constant 2 : index
    %11 = vector.load %arg2[%c0_13, %c0_14, %c0_15, %c2] : memref<1x1x8x342xbf16, #tpu.memory_space<vmem>>, vector<1x1x8x288xbf16>
    %12 = vector.shape_cast %11 : vector<1x1x8x288xbf16> to vector<8x288xbf16>
    %c2_16 = arith.constant 2 : index
    %c0_17 = arith.constant 0 : index
    %c0_18 = arith.constant 0 : index
    %13 = vector.load %arg3[%c2_16, %c0_17, %c0_18] : memref<9x8x8xbf16, #tpu.memory_space<vmem>>, vector<1x8x8xbf16>
    %14 = vector.shape_cast %13 : vector<1x8x8xbf16> to vector<8x8xbf16>
    %cst_19 = arith.constant dense<0.000000e+00> : vector<8x288xf32>
    %15 = tpu.matmul %14, %12, %cst_19 {dimension_numbers = #tpu.dot_dimension_numbers<[1], [0], [0], [1], [0, 0, 1, 1], [], []>} : vector<8x8xbf16>, vector<8x288xbf16>, vector<8x288xf32> -> vector<8x288xf32>
    %16 = arith.addf %10, %15 : vector<8x288xf32>
    %c0_20 = arith.constant 0 : index
    %c0_21 = arith.constant 0 : index
    %c0_22 = arith.constant 0 : index
    %c18 = arith.constant 18 : index
    %17 = vector.load %arg2[%c0_20, %c0_21, %c0_22, %c18] : memref<1x1x8x342xbf16, #tpu.memory_space<vmem>>, vector<1x1x8x288xbf16>
    %18 = vector.shape_cast %17 : vector<1x1x8x288xbf16> to vector<8x288xbf16>
    %c3 = arith.constant 3 : index
    %c0_23 = arith.constant 0 : index
    %c0_24 = arith.constant 0 : index
    %19 = vector.load %arg3[%c3, %c0_23, %c0_24] : memref<9x8x8xbf16, #tpu.memory_space<vmem>>, vector<1x8x8xbf16>
    %20 = vector.shape_cast %19 : vector<1x8x8xbf16> to vector<8x8xbf16>
    %cst_25 = arith.constant dense<0.000000e+00> : vector<8x288xf32>
    %21 = tpu.matmul %20, %18, %cst_25 {dimension_numbers = #tpu.dot_dimension_numbers<[1], [0], [0], [1], [0, 0, 1, 1], [], []>} : vector<8x8xbf16>, vector<8x288xbf16>, vector<8x288xf32> -> vector<8x288xf32>
    %22 = arith.addf %16, %21 : vector<8x288xf32>
    %c0_26 = arith.constant 0 : index
    %c0_27 = arith.constant 0 : index
    %c0_28 = arith.constant 0 : index
    %c19 = arith.constant 19 : index
    %23 = vector.load %arg2[%c0_26, %c0_27, %c0_28, %c19] : memref<1x1x8x342xbf16, #tpu.memory_space<vmem>>, vector<1x1x8x288xbf16>
    %24 = vector.shape_cast %23 : vector<1x1x8x288xbf16> to vector<8x288xbf16>
    %c4 = arith.constant 4 : index
    %c0_29 = arith.constant 0 : index
    %c0_30 = arith.constant 0 : index
    %25 = vector.load %arg3[%c4, %c0_29, %c0_30] : memref<9x8x8xbf16, #tpu.memory_space<vmem>>, vector<1x8x8xbf16>
    %26 = vector.shape_cast %25 : vector<1x8x8xbf16> to vector<8x8xbf16>
    %cst_31 = arith.constant dense<0.000000e+00> : vector<8x288xf32>
    %27 = tpu.matmul %26, %24, %cst_31 {dimension_numbers = #tpu.dot_dimension_numbers<[1], [0], [0], [1], [0, 0, 1, 1], [], []>} : vector<8x8xbf16>, vector<8x288xbf16>, vector<8x288xf32> -> vector<8x288xf32>
    %28 = arith.addf %22, %27 : vector<8x288xf32>
    %c0_32 = arith.constant 0 : index
    %c0_33 = arith.constant 0 : index
    %c0_34 = arith.constant 0 : index
    %c20 = arith.constant 20 : index
    %29 = vector.load %arg2[%c0_32, %c0_33, %c0_34, %c20] : memref<1x1x8x342xbf16, #tpu.memory_space<vmem>>, vector<1x1x8x288xbf16>
    %30 = vector.shape_cast %29 : vector<1x1x8x288xbf16> to vector<8x288xbf16>
    %c5 = arith.constant 5 : index
    %c0_35 = arith.constant 0 : index
    %c0_36 = arith.constant 0 : index
    %31 = vector.load %arg3[%c5, %c0_35, %c0_36] : memref<9x8x8xbf16, #tpu.memory_space<vmem>>, vector<1x8x8xbf16>
    %32 = vector.shape_cast %31 : vector<1x8x8xbf16> to vector<8x8xbf16>
    %cst_37 = arith.constant dense<0.000000e+00> : vector<8x288xf32>
    %33 = tpu.matmul %32, %30, %cst_37 {dimension_numbers = #tpu.dot_dimension_numbers<[1], [0], [0], [1], [0, 0, 1, 1], [], []>} : vector<8x8xbf16>, vector<8x288xbf16>, vector<8x288xf32> -> vector<8x288xf32>
    %34 = arith.addf %28, %33 : vector<8x288xf32>
    %c0_38 = arith.constant 0 : index
    %c0_39 = arith.constant 0 : index
    %c0_40 = arith.constant 0 : index
    %c36 = arith.constant 36 : index
    %35 = vector.load %arg2[%c0_38, %c0_39, %c0_40, %c36] : memref<1x1x8x342xbf16, #tpu.memory_space<vmem>>, vector<1x1x8x288xbf16>
    %36 = vector.shape_cast %35 : vector<1x1x8x288xbf16> to vector<8x288xbf16>
    %c6 = arith.constant 6 : index
    %c0_41 = arith.constant 0 : index
    %c0_42 = arith.constant 0 : index
    %37 = vector.load %arg3[%c6, %c0_41, %c0_42] : memref<9x8x8xbf16, #tpu.memory_space<vmem>>, vector<1x8x8xbf16>
    %38 = vector.shape_cast %37 : vector<1x8x8xbf16> to vector<8x8xbf16>
    %cst_43 = arith.constant dense<0.000000e+00> : vector<8x288xf32>
    %39 = tpu.matmul %38, %36, %cst_43 {dimension_numbers = #tpu.dot_dimension_numbers<[1], [0], [0], [1], [0, 0, 1, 1], [], []>} : vector<8x8xbf16>, vector<8x288xbf16>, vector<8x288xf32> -> vector<8x288xf32>
    %40 = arith.addf %34, %39 : vector<8x288xf32>
    %c0_44 = arith.constant 0 : index
    %c0_45 = arith.constant 0 : index
    %c0_46 = arith.constant 0 : index
    %c37 = arith.constant 37 : index
    %41 = vector.load %arg2[%c0_44, %c0_45, %c0_46, %c37] : memref<1x1x8x342xbf16, #tpu.memory_space<vmem>>, vector<1x1x8x288xbf16>
    %42 = vector.shape_cast %41 : vector<1x1x8x288xbf16> to vector<8x288xbf16>
    %c7 = arith.constant 7 : index
    %c0_47 = arith.constant 0 : index
    %c0_48 = arith.constant 0 : index
    %43 = vector.load %arg3[%c7, %c0_47, %c0_48] : memref<9x8x8xbf16, #tpu.memory_space<vmem>>, vector<1x8x8xbf16>
    %44 = vector.shape_cast %43 : vector<1x8x8xbf16> to vector<8x8xbf16>
    %cst_49 = arith.constant dense<0.000000e+00> : vector<8x288xf32>
    %45 = tpu.matmul %44, %42, %cst_49 {dimension_numbers = #tpu.dot_dimension_numbers<[1], [0], [0], [1], [0, 0, 1, 1], [], []>} : vector<8x8xbf16>, vector<8x288xbf16>, vector<8x288xf32> -> vector<8x288xf32>
    %46 = arith.addf %40, %45 : vector<8x288xf32>
    %c0_50 = arith.constant 0 : index
    %c0_51 = arith.constant 0 : index
    %c0_52 = arith.constant 0 : index
    %c38 = arith.constant 38 : index
    %47 = vector.load %arg2[%c0_50, %c0_51, %c0_52, %c38] : memref<1x1x8x342xbf16, #tpu.memory_space<vmem>>, vector<1x1x8x288xbf16>
    %48 = vector.shape_cast %47 : vector<1x1x8x288xbf16> to vector<8x288xbf16>
    %c8 = arith.constant 8 : index
    %c0_53 = arith.constant 0 : index
    %c0_54 = arith.constant 0 : index
    %49 = vector.load %arg3[%c8, %c0_53, %c0_54] : memref<9x8x8xbf16, #tpu.memory_space<vmem>>, vector<1x8x8xbf16>
    %50 = vector.shape_cast %49 : vector<1x8x8xbf16> to vector<8x8xbf16>
    %cst_55 = arith.constant dense<0.000000e+00> : vector<8x288xf32>
    %51 = tpu.matmul %50, %48, %cst_55 {dimension_numbers = #tpu.dot_dimension_numbers<[1], [0], [0], [1], [0, 0, 1, 1], [], []>} : vector<8x8xbf16>, vector<8x288xbf16>, vector<8x288xf32> -> vector<8x288xf32>
    %52 = arith.addf %46, %51 : vector<8x288xf32>
    %53 = arith.truncf %52 : vector<8x288xf32> to vector<8x288xbf16>
    %c0_56 = arith.constant 0 : index
    %c0_57 = arith.constant 0 : index
    %c0_58 = arith.constant 0 : index
    %54 = vector.load %arg5[%c0_56, %c0_57, %c0_58] : memref<1x8x288xbf16, #tpu.memory_space<vmem>>, vector<1x8x288xbf16>
    %55 = vector.shape_cast %54 : vector<1x8x288xbf16> to vector<8x288xbf16>
    %56 = vector.shape_cast %53 : vector<8x288xbf16> to vector<1x8x288xbf16>
    tpu.vector_store %arg5[%c0_56, %c0_57, %c0_58], %56 {strides = array<i32>} : memref<1x8x288xbf16, #tpu.memory_space<vmem>>, vector<1x8x288xbf16>,
    %c0_59 = arith.constant 0 : index
    %c0_60 = arith.constant 0 : index
    %57 = vector.load %arg4[%c0_59, %c0_60] : memref<1x288xf32, #tpu.memory_space<vmem>>, vector<1x288xf32>
    %58 = vector.broadcast %57 : vector<1x288xf32> to vector<8x288xf32>
    %59 = arith.mulf %52, %58 : vector<8x288xf32>
    %cst_61 = arith.constant dense<0.000000e+00> : vector<8xf32>
    %60 = vector.multi_reduction <add>, %59, %cst_61 [1] : vector<8x288xf32> to vector<8xf32>
    %61 = vector.shape_cast %60 : vector<8xf32> to vector<8x1xf32>
    %c0_62 = arith.constant 0 : index
    %c0_63 = arith.constant 0 : index
    %c0_64 = arith.constant 0 : index
    %c0_65 = arith.constant 0 : index
    %62 = vector.load %arg6[%c0_62, %c0_63, %c0_64, %c0_65] : memref<1x1x8x1xf32, #tpu.memory_space<vmem>>, vector<1x1x8x1xf32>
    %63 = vector.shape_cast %62 : vector<1x1x8x1xf32> to vector<8x1xf32>
    %64 = vector.shape_cast %61 : vector<8x1xf32> to vector<1x1x8x1xf32>
    tpu.vector_store %arg6[%c0_62, %c0_63, %c0_64, %c0_65], %64 {strides = array<i32>} : memref<1x1x8x1xf32, #tpu.memory_space<vmem>>, vector<1x1x8x1xf32>,
    %65 = arith.mulf %59, %52 : vector<8x288xf32>
    %cst_66 = arith.constant dense<0.000000e+00> : vector<8xf32>
    %66 = vector.multi_reduction <add>, %65, %cst_66 [1] : vector<8x288xf32> to vector<8xf32>
    %67 = vector.shape_cast %66 : vector<8xf32> to vector<8x1xf32>
    %c0_67 = arith.constant 0 : index
    %c0_68 = arith.constant 0 : index
    %c0_69 = arith.constant 0 : index
    %c0_70 = arith.constant 0 : index
    %68 = vector.load %arg7[%c0_67, %c0_68, %c0_69, %c0_70] : memref<1x1x8x1xf32, #tpu.memory_space<vmem>>, vector<1x1x8x1xf32>
    %69 = vector.shape_cast %68 : vector<1x1x8x1xf32> to vector<8x1xf32>
    %70 = vector.shape_cast %67 : vector<8x1xf32> to vector<1x1x8x1xf32>
    tpu.vector_store %arg7[%c0_67, %c0_68, %c0_69, %c0_70], %70 {strides = array<i32>} : memref<1x1x8x1xf32, #tpu.memory_space<vmem>>, vector<1x1x8x1xf32>,
    return
  }
  func.func @transform_0(%arg0: i32, %arg1: i32) -> (i32, i32, i32, i32) {
    %c0_i32 = arith.constant 0 : i32
    %c0_i32_0 = arith.constant 0 : i32
    %c0_i32_1 = arith.constant 0 : i32
    return %arg0, %arg1, %c0_i32, %c0_i32_0 : i32, i32, i32, i32
  }
  func.func @transform_1(%arg0: i32, %arg1: i32) -> (i32, i32, i32) {
    %c0_i32 = arith.constant 0 : i32
    %c0_i32_0 = arith.constant 0 : i32
    %c0_i32_1 = arith.constant 0 : i32
    %c0_i32_2 = arith.constant 0 : i32
    return %c0_i32, %c0_i32_0, %c0_i32_1 : i32, i32, i32
  }
  func.func @transform_2(%arg0: i32, %arg1: i32) -> (i32, i32) {
    %c0_i32 = arith.constant 0 : i32
    %c0_i32_0 = arith.constant 0 : i32
    %c0_i32_1 = arith.constant 0 : i32
    return %c0_i32, %c0_i32_0 : i32, i32
  }
  func.func @transform_3(%arg0: i32, %arg1: i32) -> (i32, i32, i32) {
    %c0_i32 = arith.constant 0 : i32
    %c0_i32_0 = arith.constant 0 : i32
    return %arg0, %c0_i32, %arg1 : i32, i32, i32
  }
  func.func @transform_4(%arg0: i32, %arg1: i32) -> (i32, i32, i32, i32) {
    %c0_i32 = arith.constant 0 : i32
    %c0_i32_0 = arith.constant 0 : i32
    %c0_i32_1 = arith.constant 0 : i32
    return %arg0, %arg1, %c0_i32, %c0_i32_0 : i32, i32, i32, i32
  }
  func.func @transform_5(%arg0: i32, %arg1: i32) -> (i32, i32, i32, i32) {
    %c0_i32 = arith.constant 0 : i32
    %c0_i32_0 = arith.constant 0 : i32
    %c0_i32_1 = arith.constant 0 : i32
    return %arg0, %arg1, %c0_i32, %c0_i32_0 : i32, i32, i32, i32
  }
}

module attributes {stable_mosaic.version = 11 : i64} {
  func.func @_bn_relu_kernel(%arg0: i32, %arg1: memref<16x288xbf16, #tpu.memory_space<vmem>>, %arg2: memref<16x1xf32, #tpu.memory_space<vmem>>, %arg3: memref<16x1xf32, #tpu.memory_space<vmem>>, %arg4: memref<16x288xf32, #tpu.memory_space<vmem>>) attributes {dimension_semantics = [#tpu.dimension_semantics<parallel>], iteration_bounds = array<i64: 1>, scalar_prefetch = 0 : i64, scratch_operands = 0 : i64, tpu.core_type = #tpu.core_type<tc>, window_params = [{transform_indices = @transform_0, window_bounds = array<i64: 16, 288>}, {transform_indices = @transform_1, window_bounds = array<i64: 16, 1>}, {transform_indices = @transform_2, window_bounds = array<i64: 16, 1>}, {transform_indices = @transform_3, window_bounds = array<i64: 16, 288>}]} {
    %c0 = arith.constant 0 : index
    %c0_0 = arith.constant 0 : index
    %0 = vector.load %arg1[%c0, %c0_0] : memref<16x288xbf16, #tpu.memory_space<vmem>>, vector<16x288xbf16>
    %1 = arith.extf %0 : vector<16x288xbf16> to vector<16x288xf32>
    %c0_1 = arith.constant 0 : index
    %c0_2 = arith.constant 0 : index
    %2 = vector.load %arg2[%c0_1, %c0_2] : memref<16x1xf32, #tpu.memory_space<vmem>>, vector<16x1xf32>
    %3 = vector.broadcast %2 : vector<16x1xf32> to vector<16x288xf32>
    %4 = arith.mulf %1, %3 : vector<16x288xf32>
    %c0_3 = arith.constant 0 : index
    %c0_4 = arith.constant 0 : index
    %5 = vector.load %arg3[%c0_3, %c0_4] : memref<16x1xf32, #tpu.memory_space<vmem>>, vector<16x1xf32>
    %6 = vector.broadcast %5 : vector<16x1xf32> to vector<16x288xf32>
    %7 = arith.addf %4, %6 : vector<16x288xf32>
    %cst = arith.constant 0.000000e+00 : f32
    %8 = vector.broadcast %cst : f32 to vector<16x288xf32>
    %9 = arith.maximumf %7, %8 : vector<16x288xf32>
    %c0_5 = arith.constant 0 : index
    %c0_6 = arith.constant 0 : index
    %10 = vector.load %arg4[%c0_5, %c0_6] : memref<16x288xf32, #tpu.memory_space<vmem>>, vector<16x288xf32>
    tpu.vector_store %arg4[%c0_5, %c0_6], %9 {strides = array<i32>} : memref<16x288xf32, #tpu.memory_space<vmem>>, vector<16x288xf32>,
    return
  }
  func.func @transform_0(%arg0: i32) -> (i32, i32) {
    %c0_i32 = arith.constant 0 : i32
    %c0_i32_0 = arith.constant 0 : i32
    return %arg0, %c0_i32 : i32, i32
  }
  func.func @transform_1(%arg0: i32) -> (i32, i32) {
    %c0_i32 = arith.constant 0 : i32
    %c0_i32_0 = arith.constant 0 : i32
    return %arg0, %c0_i32 : i32, i32
  }
  func.func @transform_2(%arg0: i32) -> (i32, i32) {
    %c0_i32 = arith.constant 0 : i32
    %c0_i32_0 = arith.constant 0 : i32
    return %arg0, %c0_i32 : i32, i32
  }
  func.func @transform_3(%arg0: i32) -> (i32, i32) {
    %c0_i32 = arith.constant 0 : i32
    %c0_i32_0 = arith.constant 0 : i32
    return %arg0, %c0_i32 : i32, i32
  }
}

</mosaic_0001>

<llo_original>
// kernel: tile.23
$region0: #{tile.23}
  #allocation0 [shape = 's32[1]{0}', space=sflag, size = 0x4, scoped, tag = 'scoped memory for tile.23']
  %s0 = inlined_call_operand.vmem [shape: f32[8], index: 0, kind: input, shape index: {}]
  %s1 = inlined_call_operand.vmem [shape: f32[2,8], index: 1, kind: output, shape index: {}]
  // Predicated region
  $region2: #{tile.23} parent=0 // pred_check
    _
  $region3: #{tile.23} parent=0 // pred_check_branch
    %3 = sbr.rel (0) target = $region5
  $region4: #{tile.23} parent=0 // pred_region
    _
  $region5: #{tile.23} parent=0 // pred_fallthru
    _
  %v4 = vld [vmem:[%s0] ss:$0 sm:$0xff]
  %5 = vst [vmem:[%s1] sm:$0x3] %v4

// kernel: tile.0
$region0: #{tile.0}
  %s0 = inlined_call_operand.vmem [shape: f32[2,8], index: 0, kind: input, shape index: {}]
  %s1 = inlined_call_operand.vmem [shape: f32[16,1], index: 1, kind: output, shape index: {}]
  $region1: #{tile.0} parent=0
    #allocation0 [shape = 'u8[4096]{0}', space=vmem, size = 0x1000, scoped, tag = 'scoped mem for input reshape']
    %s3 = ssub.s32 4, 1
    %v4 = vld [vmem:[%s0] sm:%s3]
    %5 = vst [vmem:[#allocation0] sm:%s3] %v4
    %v6 = vld [vmem:[#allocation0] sm:$0x3]
    %vm7 = vcmask 7168
    %8 = vst.msk [vmem:[%s1] ss:$8 sm:$0x3] %vm7, %v6
    %v9 = vld [vmem:[#allocation0] sm:$0x3]
    %10 = vrot.lane.b32.xlu0 %v9, 127
    %v11 = vpop.permute.xlu0 %10
    %vm12 = vcmask 7168
    %s13 = scalar_lea.vmem %s1, 1
    %14 = vst.msk [vmem:[%s13] ss:$8 sm:$0x3] %vm12, %v11
    %v15 = vld [vmem:[#allocation0] sm:$0x3]
    %16 = vrot.lane.b32.xlu0 %v15, 126
    %v17 = vpop.permute.xlu0 %16
    %vm18 = vcmask 7168
    %s19 = scalar_lea.vmem %s1, 2
    %20 = vst.msk [vmem:[%s19] ss:$8 sm:$0x3] %vm18, %v17
    %v21 = vld [vmem:[#allocation0] sm:$0x3]
    %22 = vrot.lane.b32.xlu0 %v21, 125
    %v23 = vpop.permute.xlu0 %22
    %vm24 = vcmask 7168
    %s25 = scalar_lea.vmem %s1, 3
    %26 = vst.msk [vmem:[%s25] ss:$8 sm:$0x3] %vm24, %v23
    %v27 = vld [vmem:[#allocation0] sm:$0x3]
    %28 = vrot.lane.b32.xlu0 %v27, 124
    %v29 = vpop.permute.xlu0 %28
    %vm30 = vcmask 7168
    %s31 = scalar_lea.vmem %s1, 4
    %32 = vst.msk [vmem:[%s31] ss:$8 sm:$0x3] %vm30, %v29
    %v33 = vld [vmem:[#allocation0] sm:$0x3]
    %34 = vrot.lane.b32.xlu0 %v33, 123
    %v35 = vpop.permute.xlu0 %34
    %vm36 = vcmask 7168
    %s37 = scalar_lea.vmem %s1, 5
    %38 = vst.msk [vmem:[%s37] ss:$8 sm:$0x3] %vm36, %v35
    %v39 = vld [vmem:[#allocation0] sm:$0x3]
    %40 = vrot.lane.b32.xlu0 %v39, 122
    %v41 = vpop.permute.xlu0 %40
    %vm42 = vcmask 7168
    %s43 = scalar_lea.vmem %s1, 6
    %44 = vst.msk [vmem:[%s43] ss:$8 sm:$0x3] %vm42, %v41
    %v45 = vld [vmem:[#allocation0] sm:$0x3]
    %46 = vrot.lane.b32.xlu0 %v45, 121
    %v47 = vpop.permute.xlu0 %46
    %vm48 = vcmask 7168
    %s49 = scalar_lea.vmem %s1, 7
    %50 = vst.msk [vmem:[%s49] ss:$8 sm:$0x3] %vm48, %v47

// kernel: conv_block_forward.5
$region0: #{conv_block_forward.5}
  #allocation0 [shape = 'u32[]', space=smem, size = 0x4, offset = 0x4, fixed_abs, tag = 'smem constant byte address 0x4 - core index']
  #allocation1 [shape = 'u32[72,128]{1,0:T(1,128)}', space=vmem, size = 0x9000, scoped, tag = 'internal scratch']
  %s0 = inlined_call_operand.vmem [shape: bf16[16,288], index: 0, kind: input, shape index: {}]
  %s1 = inlined_call_operand.vmem [shape: f32[16,1], index: 1, kind: input, shape index: {}]
  %s2 = inlined_call_operand.vmem [shape: f32[16,1], index: 2, kind: input, shape index: {}]
  %s3 = inlined_call_operand.vmem [shape: bf16[16,288], index: 3, kind: output, shape index: {}]
  %s4 = sld [smem:[#allocation0]]
  $region22: #{conv_block_forward.5} parent=0
    _
  %s6 = ssub.s32 1, %s4
  %s7 = scalar_select 0, %s6, %s4
  // Predicated region
  $region2: #{conv_block_forward.5} parent=0 // pred_check
    _
  $region3: #{conv_block_forward.5} parent=0 // pred_check_branch
    %9 = sbr.rel (0) target = $region5
  $region4: #{conv_block_forward.5} parent=0 // pred_region
    _
  $region5: #{conv_block_forward.5} parent=0 // pred_fallthru
    _
  // Predicated region
  $region6: #{conv_block_forward.5} parent=0 // pred_check
    _
  $region7: #{conv_block_forward.5} parent=0 // pred_check_branch
    %11 = sbr.rel (0) target = $region9
  $region8: #{conv_block_forward.5} parent=0 // pred_region
    _
  $region9: #{conv_block_forward.5} parent=0 // pred_fallthru
    _
  // Predicated region
  $region10: #{conv_block_forward.5} parent=0 // pred_check
    _
  $region11: #{conv_block_forward.5} parent=0 // pred_check_branch
    %13 = sbr.rel (0) target = $region13
  $region12: #{conv_block_forward.5} parent=0 // pred_region
    _
  $region13: #{conv_block_forward.5} parent=0 // pred_fallthru
    _
  %v14 = vld [vmem:[%s0] sm:$0xff]
  %v15 = vld [vmem:[%s0 + $0x8] sm:$0xf]
  %v16 = vld [vmem:[%s0 + $0xc] sm:$0xff]
  %v17 = vld [vmem:[%s0 + $0x14] sm:$0xf]
  %v18 = vunpack.c.l.bf16 %v14
  %v19 = vunpack.c.h.bf16 %v14
  %v20 = vunpack.c.l.bf16 %v15
  %v21 = vunpack.c.l.bf16 %v16
  %v22 = vunpack.c.h.bf16 %v16
  %v23 = vunpack.c.l.bf16 %v17
  %v24 = vld [vmem:[%s1] sm:$0xff]
  %v25 = vld [vmem:[%s1 + $0x8] sm:$0xff]
  %27 = vset.pattern.permute.xlu0 0
  %28 = vperm.xlu0 %27, %v24
  %v29 = vpop.permute.xlu0 %28
  %32 = vset.pattern.permute.xlu0 0
  %33 = vperm.xlu0 %32, %v25
  %v34 = vpop.permute.xlu0 %33
  %v36 = vmul.f32 %v18, %v29
  %v37 = vmul.f32 %v19, %v29
  %v38 = vmul.f32 %v20, %v29
  %v39 = vmul.f32 %v21, %v34
  %v40 = vmul.f32 %v22, %v34
  %v41 = vmul.f32 %v23, %v34
  %v42 = vld [vmem:[%s2] sm:$0xff]
  %v43 = vld [vmem:[%s2 + $0x8] sm:$0xff]
  %45 = vset.pattern.permute.xlu0 0
  %46 = vperm.xlu0 %45, %v42
  %v47 = vpop.permute.xlu0 %46
  %50 = vset.pattern.permute.xlu0 0
  %51 = vperm.xlu0 %50, %v43
  %v52 = vpop.permute.xlu0 %51
  %v54 = vadd.f32 %v36, %v47
  %v55 = vadd.f32 %v37, %v47
  %v56 = vadd.f32 %v38, %v47
  %v57 = vadd.f32 %v39, %v52
  %v58 = vadd.f32 %v40, %v52
  %v59 = vadd.f32 %v41, %v52
  %v60 = vmax.f32 %v54, 0.0
  %v61 = vmax.f32 %v55, 0.0
  %v62 = vmax.f32 %v56, 0.0
  %v63 = vmax.f32 %v57, 0.0
  %v64 = vmax.f32 %v58, 0.0
  %v65 = vmax.f32 %v59, 0.0
  %v66 = vpack.c.bf16 %v61, %v60
  %v67 = vpack.c.bf16 %v62, %v62
  %v68 = vpack.c.bf16 %v64, %v63
  %v69 = vpack.c.bf16 %v65, %v65
  %70 = vst [vmem:[%s3] sm:$0xff] %v66
  %vm71 = vcmask 257024
  %72 = vst.msk [vmem:[%s3 + $0x8] sm:$0xf] %vm71, %v67
  %73 = vst [vmem:[%s3 + $0xc] sm:$0xff] %v68
  %74 = vst.msk [vmem:[%s3 + $0x14] sm:$0xf] %vm71, %v69
  // Predicated region
  $region14: #{conv_block_forward.5} parent=0 // pred_check
    _
  $region15: #{conv_block_forward.5} parent=0 // pred_check_branch
    %76 = sbr.rel (0) target = $region17
  $region16: #{conv_block_forward.5} parent=0 // pred_region
    _
  $region17: #{conv_block_forward.5} parent=0 // pred_fallthru
    _
  // Predicated region
  $region18: #{conv_block_forward.5} parent=0 // pred_check
    _
  $region19: #{conv_block_forward.5} parent=0 // pred_check_branch
    %78 = sbr.rel (0) target = $region21
  $region20: #{conv_block_forward.5} parent=0 // pred_region
    _
  $region21: #{conv_block_forward.5} parent=0 // pred_fallthru
    _

// kernel: conv_block_forward.7
$region0: #{conv_block_forward.7}
  #allocation0 [shape = 'u32[]', space=smem, size = 0x4, offset = 0x4, fixed_abs, tag = 'smem constant byte address 0x4 - core index']
  #allocation1 [shape = 'u32[72,128]{1,0:T(1,128)}', space=vmem, size = 0x9000, scoped, tag = 'internal scratch']
  %s0 = inlined_call_operand.vmem [shape: bf16[16,288], index: 0, kind: input, shape index: {}]
  %s1 = inlined_call_operand.vmem [shape: f32[16,1], index: 1, kind: input, shape index: {}]
  %s2 = inlined_call_operand.vmem [shape: f32[16,1], index: 2, kind: input, shape index: {}]
  %s3 = inlined_call_operand.vmem [shape: f32[16,288], index: 3, kind: output, shape index: {}]
  %s4 = sld [smem:[#allocation0]]
  $region22: #{conv_block_forward.7} parent=0
    _
  %s6 = ssub.s32 1, %s4
  %s7 = scalar_select 0, %s6, %s4
  // Predicated region
  $region2: #{conv_block_forward.7} parent=0 // pred_check
    _
  $region3: #{conv_block_forward.7} parent=0 // pred_check_branch
    %9 = sbr.rel (0) target = $region5
  $region4: #{conv_block_forward.7} parent=0 // pred_region
    _
  $region5: #{conv_block_forward.7} parent=0 // pred_fallthru
    _
  // Predicated region
  $region6: #{conv_block_forward.7} parent=0 // pred_check
    _
  $region7: #{conv_block_forward.7} parent=0 // pred_check_branch
    %11 = sbr.rel (0) target = $region9
  $region8: #{conv_block_forward.7} parent=0 // pred_region
    _
  $region9: #{conv_block_forward.7} parent=0 // pred_fallthru
    _
  // Predicated region
  $region10: #{conv_block_forward.7} parent=0 // pred_check
    _
  $region11: #{conv_block_forward.7} parent=0 // pred_check_branch
    %13 = sbr.rel (0) target = $region13
  $region12: #{conv_block_forward.7} parent=0 // pred_region
    _
  $region13: #{conv_block_forward.7} parent=0 // pred_fallthru
    _
  %v14 = vld [vmem:[%s0] sm:$0xff]
  %v15 = vld [vmem:[%s0 + $0x8] sm:$0xf]
  %v16 = vld [vmem:[%s0 + $0xc] sm:$0xff]
  %v17 = vld [vmem:[%s0 + $0x14] sm:$0xf]
  %v18 = vunpack.c.l.bf16 %v14
  %v19 = vunpack.c.h.bf16 %v14
  %v20 = vunpack.c.l.bf16 %v15
  %v21 = vunpack.c.l.bf16 %v16
  %v22 = vunpack.c.h.bf16 %v16
  %v23 = vunpack.c.l.bf16 %v17
  %v24 = vld [vmem:[%s1] sm:$0xff]
  %v25 = vld [vmem:[%s1 + $0x8] sm:$0xff]
  %27 = vset.pattern.permute.xlu0 0
  %28 = vperm.xlu0 %27, %v24
  %v29 = vpop.permute.xlu0 %28
  %32 = vset.pattern.permute.xlu0 0
  %33 = vperm.xlu0 %32, %v25
  %v34 = vpop.permute.xlu0 %33
  %v36 = vmul.f32 %v18, %v29
  %v37 = vmul.f32 %v19, %v29
  %v38 = vmul.f32 %v20, %v29
  %v39 = vmul.f32 %v21, %v34
  %v40 = vmul.f32 %v22, %v34
  %v41 = vmul.f32 %v23, %v34
  %v42 = vld [vmem:[%s2] sm:$0xff]
  %v43 = vld [vmem:[%s2 + $0x8] sm:$0xff]
  %45 = vset.pattern.permute.xlu0 0
  %46 = vperm.xlu0 %45, %v42
  %v47 = vpop.permute.xlu0 %46
  %50 = vset.pattern.permute.xlu0 0
  %51 = vperm.xlu0 %50, %v43
  %v52 = vpop.permute.xlu0 %51
  %v54 = vadd.f32 %v36, %v47
  %v55 = vadd.f32 %v37, %v47
  %v56 = vadd.f32 %v38, %v47
  %v57 = vadd.f32 %v39, %v52
  %v58 = vadd.f32 %v40, %v52
  %v59 = vadd.f32 %v41, %v52
  %v60 = vmax.f32 %v54, 0.0
  %v61 = vmax.f32 %v55, 0.0
  %v62 = vmax.f32 %v56, 0.0
  %v63 = vmax.f32 %v57, 0.0
  %v64 = vmax.f32 %v58, 0.0
  %v65 = vmax.f32 %v59, 0.0
  %66 = vst [vmem:[%s3] sm:$0xff] %v60
  %67 = vst [vmem:[%s3 + $0x8] sm:$0xff] %v61
  %vm68 = vcmask 261120
  %69 = vst.msk [vmem:[%s3 + $0x10] sm:$0xff] %vm68, %v62
  %70 = vst [vmem:[%s3 + $0x18] sm:$0xff] %v63
  %71 = vst [vmem:[%s3 + $0x20] sm:$0xff] %v64
  %72 = vst.msk [vmem:[%s3 + $0x28] sm:$0xff] %vm68, %v65
  // Predicated region
  $region14: #{conv_block_forward.7} parent=0 // pred_check
    _
  $region15: #{conv_block_forward.7} parent=0 // pred_check_branch
    %74 = sbr.rel (0) target = $region17
  $region16: #{conv_block_forward.7} parent=0 // pred_region
    _
  $region17: #{conv_block_forward.7} parent=0 // pred_fallthru
    _
  // Predicated region
  $region18: #{conv_block_forward.7} parent=0 // pred_check
    _
  $region19: #{conv_block_forward.7} parent=0 // pred_check_branch
    %76 = sbr.rel (0) target = $region21
  $region20: #{conv_block_forward.7} parent=0 // pred_region
    _
  $region21: #{conv_block_forward.7} parent=0 // pred_fallthru
    _

// kernel: conv_block_forward.4
$region0: #{conv_block_forward.4}
  #allocation0 [shape = 'u32[]', space=smem, size = 0x4, offset = 0x4, fixed_abs, tag = 'smem constant byte address 0x4 - core index']
  #allocation1 [shape = 'u32[72,128]{1,0:T(1,128)}', space=vmem, size = 0x9000, scoped, tag = 'internal scratch']
  %s0 = inlined_call_operand.vmem [shape: bf16[2,1,4,342], index: 0, kind: input, shape index: {}]
  %s1 = inlined_call_operand.vmem [shape: bf16[9,8,4], index: 1, kind: input, shape index: {}]
  %s2 = inlined_call_operand.vmem [shape: f32[1,288], index: 2, kind: input, shape index: {}]
  %s3 = inlined_call_operand.vmem [shape: bf16[2,8,288], index: 3, kind: output, shape index: {0}]
  %s4 = inlined_call_operand.vmem [shape: f32[2,1,8,1], index: 4, kind: output, shape index: {1}]
  %s5 = inlined_call_operand.vmem [shape: f32[2,1,8,1], index: 5, kind: output, shape index: {2}]
  %6 = xla_tuple %s3, %s4, %s5
  %s7 = sld [smem:[#allocation0]]
  $region61: #{conv_block_forward.4} parent=0
    _
  %s9 = ssub.s32 1, %s7
  %s10 = scalar_select 0, %s9, %s7
  loop: start=0, step=1, limit=4
  $region2: #{conv_block_forward.4} parent=0 // loop_pre_header
    _
  $region3: #{conv_block_forward.4} parent=0 // loop_header
    %s12 = sphi 0, %s16
    %p13 = scmp.ge.s32.totalorder %s12, 4
    %s19 = sphi 0, %s31
    %s20 = sphi 0, %s27
    %s21 = sphi 0, %s19
    %s22 = sphi 0, %s20
    %s23 = sphi 0, %s21
    %s24 = sphi 0, %s22
    %s36 = sphi 0, %s38
    %s39 = sphi 0, %s36
    %s40 = sphi 0, %s39
    %s56 = sphi 0, %s40
    %s60 = sphi 0, %s60
    %s62 = sphi 0, %s60
    %s63 = sphi 0, %s62
    %s77 = sphi 0, %s63
    %s81 = sphi 0, %s81
    %s83 = sphi 0, %s81
    %s84 = sphi 0, %s83
    %s98 = sphi 0, %s84
    %s106 = sphi 0, %s108
    %s109 = sphi 0, %s106
    %s110 = sphi 0, %s109
    %s126 = sphi 0, %s110
    %s134 = sphi 0, %s136
    %s137 = sphi 0, %s134
    %s138 = sphi 0, %s137
    %s154 = sphi 0, %s138
    %s162 = sphi 0, %s164
    %s165 = sphi 0, %s162
    %s166 = sphi 0, %s165
    %s182 = sphi 0, %s166
  $region4: #{conv_block_forward.4} parent=0 // loop_header_branch
    %15 = sbr.rel (%p13) target = $region8
  $region5: #{conv_block_forward.4} parent=0 // loop_body
    %s17 = ssub.s32 %s12, 1
    %s18 = ssub.s32 %s12, 2
    %s25 = sadd.s32 1, %s20
    %p26 = scmp.ge.s32.totalorder %s25, 1
    %s27 = scalar_select %p26, 0, %s25
    %s28 = sadd.s32 1, %s19
    %s29 = scalar_select %p26, %s28, %s19
    %p30 = scmp.ge.s32.totalorder %s29, 2
    %s31 = scalar_select %p30, 0, %s29
    %s32 = ssub.s32 %s19, %s31
    %s33 = ssub.s32 %s20, %s27
    %s34 = sor.u32 %s32, %s33
    %p35 = scmp.eq.s32.totalorder %s34, 0
    %s37 = sadd.s32 %s36, 1
    %s38 = scalar_select %p35, %s36, %s37
    %p41 = pneg %p35
    %p42 = scmp.eq.s32.totalorder %s12, 1
    %p43 = por %p41, %p42
    %p44 = scmp.ne.s32.totalorder %s36, %s39
    %p45 = scmp.eq.s32.totalorder %s12, 0
    %p46 = por %p44, %p45
    %p47 = scmp.ne.s32.totalorder %s36, %s39
    %p48 = scmp.eq.s32.totalorder %s17, 1
    %p49 = por %p47, %p48
    %p50 = scmp.ne.s32.totalorder %s39, %s40
    %p51 = scmp.eq.s32.totalorder %s17, 0
    %p52 = por %p50, %p51
    %p53 = scmp.ne.s32.totalorder %s39, %s40
    %p54 = scmp.eq.s32.totalorder %s18, 1
    %p55 = por %p53, %p54
    %p57 = scmp.ne.s32.totalorder %s40, %s56
    %p58 = scmp.eq.s32.totalorder %s18, 0
    %p59 = por %p57, %p58
    %s61 = sadd.s32 %s60, 1
    %p64 = scmp.eq.s32.totalorder %s12, 1
    %p65 = scmp.ne.s32.totalorder %s60, %s62
    %p66 = scmp.eq.s32.totalorder %s12, 0
    %p67 = por %p65, %p66
    %p68 = scmp.ne.s32.totalorder %s60, %s62
    %p69 = scmp.eq.s32.totalorder %s17, 1
    %p70 = por %p68, %p69
    %p71 = scmp.ne.s32.totalorder %s62, %s63
    %p72 = scmp.eq.s32.totalorder %s17, 0
    %p73 = por %p71, %p72
    %p74 = scmp.ne.s32.totalorder %s62, %s63
    %p75 = scmp.eq.s32.totalorder %s18, 1
    %p76 = por %p74, %p75
    %p78 = scmp.ne.s32.totalorder %s63, %s77
    %p79 = scmp.eq.s32.totalorder %s18, 0
    %p80 = por %p78, %p79
    %s82 = sadd.s32 %s81, 1
    %p85 = scmp.eq.s32.totalorder %s12, 1
    %p86 = scmp.ne.s32.totalorder %s81, %s83
    %p87 = scmp.eq.s32.totalorder %s12, 0
    %p88 = por %p86, %p87
    %p89 = scmp.ne.s32.totalorder %s81, %s83
    %p90 = scmp.eq.s32.totalorder %s17, 1
    %p91 = por %p89, %p90
    %p92 = scmp.ne.s32.totalorder %s83, %s84
    %p93 = scmp.eq.s32.totalorder %s17, 0
    %p94 = por %p92, %p93
    %p95 = scmp.ne.s32.totalorder %s83, %s84
    %p96 = scmp.eq.s32.totalorder %s18, 1
    %p97 = por %p95, %p96
    %p99 = scmp.ne.s32.totalorder %s84, %s98
    %p100 = scmp.eq.s32.totalorder %s18, 0
    %p101 = por %p99, %p100
    %s102 = ssub.s32 %s19, %s31
    %s103 = ssub.s32 %s20, %s27
    %s104 = sor.u32 %s102, %s103
    %p105 = scmp.eq.s32.totalorder %s104, 0
    %s107 = sadd.s32 %s106, 1
    %s108 = scalar_select %p105, %s106, %s107
    %p111 = pneg %p105
    %p112 = scmp.eq.s32.totalorder %s12, 1
    %p113 = por %p111, %p112
    %p114 = scmp.ne.s32.totalorder %s106, %s109
    %p115 = scmp.eq.s32.totalorder %s12, 0
    %p116 = por %p114, %p115
    %p117 = scmp.ne.s32.totalorder %s106, %s109
    %p118 = scmp.eq.s32.totalorder %s17, 1
    %p119 = por %p117, %p118
    %p120 = scmp.ne.s32.totalorder %s109, %s110
    %p121 = scmp.eq.s32.totalorder %s17, 0
    %p122 = por %p120, %p121
    %p123 = scmp.ne.s32.totalorder %s109, %s110
    %p124 = scmp.eq.s32.totalorder %s18, 1
    %p125 = por %p123, %p124
    %p127 = scmp.ne.s32.totalorder %s110, %s126
    %p128 = scmp.eq.s32.totalorder %s18, 0
    %p129 = por %p127, %p128
    %s130 = ssub.s32 %s19, %s31
    %s131 = ssub.s32 %s20, %s27
    %s132 = sor.u32 %s130, %s131
    %p133 = scmp.eq.s32.totalorder %s132, 0
    %s135 = sadd.s32 %s134, 1
    %s136 = scalar_select %p133, %s134, %s135
    %p139 = pneg %p133
    %p140 = scmp.eq.s32.totalorder %s12, 1
    %p141 = por %p139, %p140
    %p142 = scmp.ne.s32.totalorder %s134, %s137
    %p143 = scmp.eq.s32.totalorder %s12, 0
    %p144 = por %p142, %p143
    %p145 = scmp.ne.s32.totalorder %s134, %s137
    %p146 = scmp.eq.s32.totalorder %s17, 1
    %p147 = por %p145, %p146
    %p148 = scmp.ne.s32.totalorder %s137, %s138
    %p149 = scmp.eq.s32.totalorder %s17, 0
    %p150 = por %p148, %p149
    %p151 = scmp.ne.s32.totalorder %s137, %s138
    %p152 = scmp.eq.s32.totalorder %s18, 1
    %p153 = por %p151, %p152
    %p155 = scmp.ne.s32.totalorder %s138, %s154
    %p156 = scmp.eq.s32.totalorder %s18, 0
    %p157 = por %p155, %p156
    %s158 = ssub.s32 %s19, %s31
    %s159 = ssub.s32 %s20, %s27
    %s160 = sor.u32 %s158, %s159
    %p161 = scmp.eq.s32.totalorder %s160, 0
    %s163 = sadd.s32 %s162, 1
    %s164 = scalar_select %p161, %s162, %s163
    %p167 = pneg %p161
    %p168 = scmp.eq.s32.totalorder %s12, 1
    %p169 = por %p167, %p168
    %p170 = scmp.ne.s32.totalorder %s162, %s165
    %p171 = scmp.eq.s32.totalorder %s12, 0
    %p172 = por %p170, %p171
    %p173 = scmp.ne.s32.totalorder %s162, %s165
    %p174 = scmp.eq.s32.totalorder %s17, 1
    %p175 = por %p173, %p174
    %p176 = scmp.ne.s32.totalorder %s165, %s166
    %p177 = scmp.eq.s32.totalorder %s17, 0
    %p178 = por %p176, %p177
    %p179 = scmp.ne.s32.totalorder %s165, %s166
    %p180 = scmp.eq.s32.totalorder %s18, 1
    %p181 = por %p179, %p180
    %p183 = scmp.ne.s32.totalorder %s166, %s182
    %p184 = scmp.eq.s32.totalorder %s18, 0
    %p185 = por %p183, %p184
    %p186 = scmp.le.s32.totalorder 1, %s12
    %p187 = scmp.lt.s32.totalorder %s12, 3
    %p188 = pnand %p186, %p187
    %p189 = pneg %p188
    // Predicated region
    $region9: #{conv_block_forward.4} parent=5 // pred_check
      _
    $region10: #{conv_block_forward.4} parent=5 // pred_check_branch
      %191 = sbr.rel (%p188) target = $region12
    $region11: #{conv_block_forward.4} parent=5 // pred_region
      %s192 = ssub.s32 %s12, 1
      // Predicated region
      $region13: #{conv_block_forward.4} parent=11 // pred_check
        %p193 = pneg %p73
      $region14: #{conv_block_forward.4} parent=11 // pred_check_branch
        %195 = sbr.rel (%p193) target = $region16
      $region15: #{conv_block_forward.4} parent=11 // pred_region
        _
      $region16: #{conv_block_forward.4} parent=11 // pred_fallthru
        _
      // Predicated region
      $region17: #{conv_block_forward.4} parent=11 // pred_check
        %p196 = pneg %p94
      $region18: #{conv_block_forward.4} parent=11 // pred_check_branch
        %198 = sbr.rel (%p196) target = $region20
      $region19: #{conv_block_forward.4} parent=11 // pred_region
        _
      $region20: #{conv_block_forward.4} parent=11 // pred_fallthru
        _
    $region12: #{conv_block_forward.4} parent=5 // pred_fallthru
      _
    %p199 = scmp.lt.s32.totalorder %s12, 2
    // Predicated region
    $region21: #{conv_block_forward.4} parent=5 // pred_check
      %p200 = pneg %p199
    $region22: #{conv_block_forward.4} parent=5 // pred_check_branch
      %202 = sbr.rel (%p200) target = $region24
    $region23: #{conv_block_forward.4} parent=5 // pred_region
      // Predicated region
      $region25: #{conv_block_forward.4} parent=23 // pred_check
        %p203 = pneg %p46
      $region26: #{conv_block_forward.4} parent=23 // pred_check_branch
        %205 = sbr.rel (%p203) target = $region28
      $region27: #{conv_block_forward.4} parent=23 // pred_region
        %p206 = scmp.lt.s32.totalorder %s19, 1
        %s207 = scalar_select %p206, %s19, 1
        %p208 = scmp.lt.s32.totalorder %s20, 0
        %s209 = scalar_select %p208, %s20, 0
        %s210 = smul.addr %s209, 3
        %s211 = smul.addr %s207, 3
        %s212 = sadd.s32 %s210, %s211
        %s213 = smul.addr %s212, 2
        %s214 = scalar_lea.vmem %s0, %s213
      $region28: #{conv_block_forward.4} parent=23 // pred_fallthru
        _
    $region24: #{conv_block_forward.4} parent=5 // pred_fallthru
      _
    %p215 = scmp.le.s32.totalorder 1, %s12
    %p216 = scmp.lt.s32.totalorder %s12, 3
    %p217 = pnand %p215, %p216
    %p218 = pneg %p217
    // Predicated region
    $region29: #{conv_block_forward.4} parent=5 // pred_check
      _
    $region30: #{conv_block_forward.4} parent=5 // pred_check_branch
      %220 = sbr.rel (%p217) target = $region32
    $region31: #{conv_block_forward.4} parent=5 // pred_region
      %s221 = ssub.s32 %s12, 1
      %p222 = scmp.lt.s32.totalorder %s21, 1
      %s223 = scalar_select %p222, %s21, 1
      %p224 = scmp.lt.s32.totalorder %s22, 0
      %s225 = scalar_select %p224, %s22, 0
      %s226 = smul.addr %s225, 3
      %s227 = smul.addr %s223, 3
      %s228 = sadd.s32 %s226, %s227
      %s229 = smul.addr %s228, 2
      %s230 = scalar_lea.vmem %s0, %s229
      %p231 = pneg %p52
      %p232 = pneg %p49
      %p233 = pneg %p73
      %p234 = pneg %p70
      %p235 = pneg %p94
      %p236 = pneg %p91
      %p237 = pneg %p122
      %p238 = pneg %p119
      %s239 = smul.u32 3, %s22
      %p240 = scmp.lt.s32.totalorder %s21, 1
      %s241 = scalar_select %p240, %s21, 1
      %p242 = scmp.lt.s32.totalorder %s239, 2
      %s243 = scalar_select %p242, %s239, 2
      %s244 = smul.addr %s241, 3
      %s245 = sadd.s32 %s243, %s244
      %s246 = smul.addr %s245, 4
      %s247 = scalar_lea.vmem %s3, %s246
      %p248 = pneg %p150
      %p249 = pneg %p147
      %p250 = scmp.lt.s32.totalorder %s21, 1
      %s251 = scalar_select %p250, %s21, 1
      %p252 = scmp.lt.s32.totalorder %s22, 0
      %s253 = scalar_select %p252, %s22, 0
      %s254 = sadd.s32 %s253, %s251
      %s255 = smul.addr %s254, 8
      %s256 = scalar_lea.vmem %s4, %s255
      %p257 = pneg %p178
      %p258 = pneg %p175
      %p259 = scmp.lt.s32.totalorder %s21, 1
      %s260 = scalar_select %p259, %s21, 1
      %p261 = scmp.lt.s32.totalorder %s22, 0
      %s262 = scalar_select %p261, %s22, 0
      %s263 = sadd.s32 %s262, %s260
      %s264 = smul.addr %s263, 8
      %s265 = scalar_lea.vmem %s5, %s264
      %p266 = scmp.lt.s32.totalorder %s21, 1
      %s267 = scalar_select %p266, %s21, 1
      %p268 = scmp.lt.s32.totalorder %s22, 0
      %s269 = scalar_select %p268, %s22, 0
      %s270 = smul.addr %s269, 3
      %s271 = smul.addr %s267, 3
      %s272 = sadd.s32 %s270, %s271
      %s273 = smul.addr %s272, 2
      %s274 = scalar_lea.vmem %s0, %s273
      %s275 = smul.u32 3, %s22
      %p276 = scmp.lt.s32.totalorder %s21, 1
      %s277 = scalar_select %p276, %s21, 1
      %p278 = scmp.lt.s32.totalorder %s275, 2
      %s279 = scalar_select %p278, %s275, 2
      %s280 = smul.addr %s277, 3
      %s281 = sadd.s32 %s279, %s280
      %s282 = smul.addr %s281, 4
      %s283 = scalar_lea.vmem %s3, %s282
      %s284 = smul.u32 3, %s22
      %p285 = scmp.lt.s32.totalorder %s21, 1
      %s286 = scalar_select %p285, %s21, 1
      %p287 = scmp.lt.s32.totalorder %s22, 0
      %s288 = scalar_select %p287, %s22, 0
      %s289 = sadd.s32 %s288, %s286
      %s290 = smul.addr %s289, 8
      %s291 = scalar_lea.vmem %s4, %s290
      %p292 = scmp.lt.s32.totalorder %s21, 1
      %s293 = scalar_select %p292, %s21, 1
      %p294 = scmp.lt.s32.totalorder %s22, 0
      %s295 = scalar_select %p294, %s22, 0
      %s296 = sadd.s32 %s295, %s293
      %s297 = smul.addr %s296, 8
      %s298 = scalar_lea.vmem %s5, %s297
      %v300 = vld [vmem:[%s274] sm:$0x3f]
      %v301 = vld [vmem:[%s1] sm:$0xf]
      %s302 = scalar_lea.vmem %s1, 4
      %v303 = vld [vmem:[%s302] sm:$0xf]
      %305 = vst [vmem:[#allocation1] ss:$4 sm:$0xff] %v300
      %v306 = vld.sshfl [vmem:[#allocation1] sm:$0xff pattern:$0x73625140]
      %v308 = vld.sshfl [vmem:[#allocation1 + $0x8] sm:$0xff pattern:$0x73625140]
      %v310 = vld.sshfl [vmem:[#allocation1 + $0x10] sm:$0xff pattern:$0x73625140]
      %312 = vrot.lane.b32.xlu0 %v306, 127
      %v313 = vpop.permute.xlu0 %312
      %314 = vrot.lane.b32.xlu0 %v308, 127
      %v315 = vpop.permute.xlu0 %314
      %316 = vrot.lane.b32.xlu0 %v310, 127
      %v317 = vpop.permute.xlu0 %316
      %vm318 = vcmask 1039360
      %v319 = vsel %vm318, %v313, %v315
      %v320 = vsel %vm318, %v315, %v317
      %vm321 = vcmask 31744
      %v323 = vsel %vm321, %v303, 0
      %vm325 = vcmask 1041408
      %v327 = vsel %vm325, %v319, 0
      %v330 = vsel %vm325, %v320, 0
      %v333 = vsel %vm325, %v317, 0
      %335 = vmatpush.bf16.msra.mxu0 0
      %336 = vmatpush.bf16.msra.mxu0 0
      %337 = vmatpush.bf16.msra.mxu0 0
      %338 = vmatpush.bf16.msra.mxu0 0
      %339 = vmatpush.bf16.msra.mxu0 0
      %340 = vmatpush.bf16.msra.mxu0 0
      %341 = vmatpush.bf16.msra.mxu0 0
      %342 = vmatpush.bf16.msra.mxu0 %v327
      %343 = vmatmul.bf16.gmra.mxu0 %v323
      %v344 = vpop.f32.mrf.mxu0
      %v345 = vadd.f32 0.0, %v344
      %v346 = vpop.f32.mrf.mxu0
      %347 = vdwg.mxu0
      %348 = vmatpush.bf16.msra.mxu0 0
      %349 = vmatpush.bf16.msra.mxu0 0
      %350 = vmatpush.bf16.msra.mxu0 0
      %351 = vmatpush.bf16.msra.mxu0 0
      %352 = vmatpush.bf16.msra.mxu0 0
      %353 = vmatpush.bf16.msra.mxu0 0
      %354 = vmatpush.bf16.msra.mxu0 0
      %355 = vmatpush.bf16.msra.mxu0 %v330
      %356 = vmatmul.bf16.gmra.mxu0 %v323
      %v357 = vpop.f32.mrf.mxu0
      %v358 = vadd.f32 0.0, %v357
      %v359 = vpop.f32.mrf.mxu0
      %360 = vdwg.mxu0
      %361 = vmatpush.bf16.msra.mxu0 0
      %362 = vmatpush.bf16.msra.mxu0 0
      %363 = vmatpush.bf16.msra.mxu0 0
      %364 = vmatpush.bf16.msra.mxu0 0
      %365 = vmatpush.bf16.msra.mxu0 0
      %366 = vmatpush.bf16.msra.mxu0 0
      %367 = vmatpush.bf16.msra.mxu0 0
      %368 = vmatpush.bf16.msra.mxu0 %v333
      %369 = vmatmul.bf16.gmra.mxu0 %v323
      %v370 = vpop.f32.mrf.mxu0
      %v371 = vadd.f32 0.0, %v370
      %v372 = vpop.f32.mrf.mxu0
      %373 = vdwg.mxu0
      %374 = vst [vmem:[#allocation1] ss:$4 sm:$0xff] %v300
      %v375 = vld.sshfl [vmem:[#allocation1] sm:$0xff pattern:$0x73625140]
      %v376 = vld.sshfl [vmem:[#allocation1 + $0x8] sm:$0xff pattern:$0x73625140]
      %v377 = vld.sshfl [vmem:[#allocation1 + $0x10] sm:$0xff pattern:$0x73625140]
      %v379 = vsel %vm321, %v301, 0
      %v381 = vsel %vm325, %v375, 0
      %v383 = vsel %vm325, %v376, 0
      %v385 = vsel %vm325, %v377, 0
      %387 = vmatpush.bf16.msra.mxu0 0
      %388 = vmatpush.bf16.msra.mxu0 0
      %389 = vmatpush.bf16.msra.mxu0 0
      %390 = vmatpush.bf16.msra.mxu0 0
      %391 = vmatpush.bf16.msra.mxu0 0
      %392 = vmatpush.bf16.msra.mxu0 0
      %393 = vmatpush.bf16.msra.mxu0 0
      %394 = vmatpush.bf16.msra.mxu0 %v381
      %395 = vmatmul.bf16.gmra.mxu0 %v379
      %v396 = vpop.f32.mrf.mxu0
      %v397 = vadd.f32 %v345, %v396
      %v398 = vpop.f32.mrf.mxu0
      %399 = vdwg.mxu0
      %400 = vmatpush.bf16.msra.mxu0 0
      %401 = vmatpush.bf16.msra.mxu0 0
      %402 = vmatpush.bf16.msra.mxu0 0
      %403 = vmatpush.bf16.msra.mxu0 0
      %404 = vmatpush.bf16.msra.mxu0 0
      %405 = vmatpush.bf16.msra.mxu0 0
      %406 = vmatpush.bf16.msra.mxu0 0
      %407 = vmatpush.bf16.msra.mxu0 %v383
      %408 = vmatmul.bf16.gmra.mxu0 %v379
      %v409 = vpop.f32.mrf.mxu0
      %v410 = vadd.f32 %v358, %v409
      %v411 = vpop.f32.mrf.mxu0
      %412 = vdwg.mxu0
      %413 = vmatpush.bf16.msra.mxu0 0
      %414 = vmatpush.bf16.msra.mxu0 0
      %415 = vmatpush.bf16.msra.mxu0 0
      %416 = vmatpush.bf16.msra.mxu0 0
      %417 = vmatpush.bf16.msra.mxu0 0
      %418 = vmatpush.bf16.msra.mxu0 0
      %419 = vmatpush.bf16.msra.mxu0 0
      %420 = vmatpush.bf16.msra.mxu0 %v385
      %421 = vmatmul.bf16.gmra.mxu0 %v379
      %v422 = vpop.f32.mrf.mxu0
      %v423 = vadd.f32 %v371, %v422
      %v424 = vpop.f32.mrf.mxu0
      %425 = vdwg.mxu0
      %v426 = vld [vmem:[%s274] sm:$0x3f]
      %s427 = scalar_lea.vmem %s1, 8
      %v428 = vld [vmem:[%s427] sm:$0xf]
      %430 = vst [vmem:[#allocation1] ss:$4 sm:$0xff] %v426
      %v431 = vld.sshfl [vmem:[#allocation1] sm:$0xff pattern:$0x73625140]
      %v433 = vld.sshfl [vmem:[#allocation1 + $0x8] sm:$0xff pattern:$0x73625140]
      %v435 = vld.sshfl [vmem:[#allocation1 + $0x10] sm:$0xff pattern:$0x73625140]
      %437 = vrot.lane.b32.xlu0 %v431, 126
      %v438 = vpop.permute.xlu0 %437
      %439 = vrot.lane.b32.xlu0 %v433, 126
      %v440 = vpop.permute.xlu0 %439
      %441 = vrot.lane.b32.xlu0 %v435, 126
      %v442 = vpop.permute.xlu0 %441
      %vm443 = vcmask 1031168
      %v444 = vsel %vm443, %v438, %v440
      %v445 = vsel %vm443, %v440, %v442
      %v447 = vsel %vm321, %v428, 0
      %v450 = vsel %vm325, %v444, 0
      %v453 = vsel %vm325, %v445, 0
      %v456 = vsel %vm325, %v442, 0
      %458 = vmatpush.bf16.msra.mxu0 0
      %459 = vmatpush.bf16.msra.mxu0 0
      %460 = vmatpush.bf16.msra.mxu0 0
      %461 = vmatpush.bf16.msra.mxu0 0
      %462 = vmatpush.bf16.msra.mxu0 0
      %463 = vmatpush.bf16.msra.mxu0 0
      %464 = vmatpush.bf16.msra.mxu0 0
      %465 = vmatpush.bf16.msra.mxu0 %v450
      %466 = vmatmul.bf16.gmra.mxu0 %v447
      %v467 = vpop.f32.mrf.mxu0
      %v468 = vadd.f32 0.0, %v467
      %v469 = vpop.f32.mrf.mxu0
      %470 = vdwg.mxu0
      %471 = vmatpush.bf16.msra.mxu0 0
      %472 = vmatpush.bf16.msra.mxu0 0
      %473 = vmatpush.bf16.msra.mxu0 0
      %474 = vmatpush.bf16.msra.mxu0 0
      %475 = vmatpush.bf16.msra.mxu0 0
      %476 = vmatpush.bf16.msra.mxu0 0
      %477 = vmatpush.bf16.msra.mxu0 0
      %478 = vmatpush.bf16.msra.mxu0 %v453
      %479 = vmatmul.bf16.gmra.mxu0 %v447
      %v480 = vpop.f32.mrf.mxu0
      %v481 = vadd.f32 0.0, %v480
      %v482 = vpop.f32.mrf.mxu0
      %483 = vdwg.mxu0
      %484 = vmatpush.bf16.msra.mxu0 0
      %485 = vmatpush.bf16.msra.mxu0 0
      %486 = vmatpush.bf16.msra.mxu0 0
      %487 = vmatpush.bf16.msra.mxu0 0
      %488 = vmatpush.bf16.msra.mxu0 0
      %489 = vmatpush.bf16.msra.mxu0 0
      %490 = vmatpush.bf16.msra.mxu0 0
      %491 = vmatpush.bf16.msra.mxu0 %v456
      %492 = vmatmul.bf16.gmra.mxu0 %v447
      %v493 = vpop.f32.mrf.mxu0
      %v494 = vadd.f32 0.0, %v493
      %v495 = vpop.f32.mrf.mxu0
      %496 = vdwg.mxu0
      %v497 = vadd.f32 %v397, %v468
      %v498 = vadd.f32 %v410, %v481
      %v499 = vadd.f32 %v423, %v494
      %v500 = vld [vmem:[%s274] sm:$0x3f]
      %s501 = scalar_lea.vmem %s1, 12
      %v502 = vld [vmem:[%s501] sm:$0xf]
      %504 = vst [vmem:[#allocation1] ss:$4 sm:$0xff] %v500
      %v505 = vld.sshfl [vmem:[#allocation1] sm:$0xff pattern:$0x73625140]
      %v507 = vld.sshfl [vmem:[#allocation1 + $0x8] sm:$0xff pattern:$0x73625140]
      %v509 = vld.sshfl [vmem:[#allocation1 + $0x10] sm:$0xff pattern:$0x73625140]
      %511 = vrot.lane.b32.xlu0 %v505, 110
      %v512 = vpop.permute.xlu0 %511
      %513 = vrot.lane.b32.xlu0 %v507, 110
      %v514 = vpop.permute.xlu0 %513
      %515 = vrot.lane.b32.xlu0 %v509, 110
      %v516 = vpop.permute.xlu0 %515
      %vm517 = vcmask 900096
      %v518 = vsel %vm517, %v512, %v514
      %v519 = vsel %vm517, %v514, %v516
      %v521 = vsel %vm321, %v502, 0
      %v524 = vsel %vm325, %v518, 0
      %v527 = vsel %vm325, %v519, 0
      %v530 = vsel %vm325, %v516, 0
      %532 = vmatpush.bf16.msra.mxu0 0
      %533 = vmatpush.bf16.msra.mxu0 0
      %534 = vmatpush.bf16.msra.mxu0 0
      %535 = vmatpush.bf16.msra.mxu0 0
      %536 = vmatpush.bf16.msra.mxu0 0
      %537 = vmatpush.bf16.msra.mxu0 0
      %538 = vmatpush.bf16.msra.mxu0 0
      %539 = vmatpush.bf16.msra.mxu0 %v524
      %540 = vmatmul.bf16.gmra.mxu0 %v521
      %v541 = vpop.f32.mrf.mxu0
      %v542 = vadd.f32 0.0, %v541
      %v543 = vpop.f32.mrf.mxu0
      %544 = vdwg.mxu0
      %545 = vmatpush.bf16.msra.mxu0 0
      %546 = vmatpush.bf16.msra.mxu0 0
      %547 = vmatpush.bf16.msra.mxu0 0
      %548 = vmatpush.bf16.msra.mxu0 0
      %549 = vmatpush.bf16.msra.mxu0 0
      %550 = vmatpush.bf16.msra.mxu0 0
      %551 = vmatpush.bf16.msra.mxu0 0
      %552 = vmatpush.bf16.msra.mxu0 %v527
      %553 = vmatmul.bf16.gmra.mxu0 %v521
      %v554 = vpop.f32.mrf.mxu0
      %v555 = vadd.f32 0.0, %v554
      %v556 = vpop.f32.mrf.mxu0
      %557 = vdwg.mxu0
      %558 = vmatpush.bf16.msra.mxu0 0
      %559 = vmatpush.bf16.msra.mxu0 0
      %560 = vmatpush.bf16.msra.mxu0 0
      %561 = vmatpush.bf16.msra.mxu0 0
      %562 = vmatpush.bf16.msra.mxu0 0
      %563 = vmatpush.bf16.msra.mxu0 0
      %564 = vmatpush.bf16.msra.mxu0 0
      %565 = vmatpush.bf16.msra.mxu0 %v530
      %566 = vmatmul.bf16.gmra.mxu0 %v521
      %v567 = vpop.f32.mrf.mxu0
      %v568 = vadd.f32 0.0, %v567
      %v569 = vpop.f32.mrf.mxu0
      %570 = vdwg.mxu0
      %v571 = vadd.f32 %v497, %v542
      %v572 = vadd.f32 %v498, %v555
      %v573 = vadd.f32 %v499, %v568
      %v574 = vld [vmem:[%s274] sm:$0x3f]
      %s575 = scalar_lea.vmem %s1, 16
      %v576 = vld [vmem:[%s575] sm:$0xf]
      %578 = vst [vmem:[#allocation1] ss:$4 sm:$0xff] %v574
      %v579 = vld.sshfl [vmem:[#allocation1] sm:$0xff pattern:$0x73625140]
      %v581 = vld.sshfl [vmem:[#allocation1 + $0x8] sm:$0xff pattern:$0x73625140]
      %v583 = vld.sshfl [vmem:[#allocation1 + $0x10] sm:$0xff pattern:$0x73625140]
      %585 = vrot.lane.b32.xlu0 %v579, 109
      %v586 = vpop.permute.xlu0 %585
      %587 = vrot.lane.b32.xlu0 %v581, 109
      %v588 = vpop.permute.xlu0 %587
      %589 = vrot.lane.b32.xlu0 %v583, 109
      %v590 = vpop.permute.xlu0 %589
      %vm591 = vcmask 891904
      %v592 = vsel %vm591, %v586, %v588
      %v593 = vsel %vm591, %v588, %v590
      %v595 = vsel %vm321, %v576, 0
      %v598 = vsel %vm325, %v592, 0
      %v601 = vsel %vm325, %v593, 0
      %v604 = vsel %vm325, %v590, 0
      %606 = vmatpush.bf16.msra.mxu0 0
      %607 = vmatpush.bf16.msra.mxu0 0
      %608 = vmatpush.bf16.msra.mxu0 0
      %609 = vmatpush.bf16.msra.mxu0 0
      %610 = vmatpush.bf16.msra.mxu0 0
      %611 = vmatpush.bf16.msra.mxu0 0
      %612 = vmatpush.bf16.msra.mxu0 0
      %613 = vmatpush.bf16.msra.mxu0 %v598
      %614 = vmatmul.bf16.gmra.mxu0 %v595
      %v615 = vpop.f32.mrf.mxu0
      %v616 = vadd.f32 0.0, %v615
      %v617 = vpop.f32.mrf.mxu0
      %618 = vdwg.mxu0
      %619 = vmatpush.bf16.msra.mxu0 0
      %620 = vmatpush.bf16.msra.mxu0 0
      %621 = vmatpush.bf16.msra.mxu0 0
      %622 = vmatpush.bf16.msra.mxu0 0
      %623 = vmatpush.bf16.msra.mxu0 0
      %624 = vmatpush.bf16.msra.mxu0 0
      %625 = vmatpush.bf16.msra.mxu0 0
      %626 = vmatpush.bf16.msra.mxu0 %v601
      %627 = vmatmul.bf16.gmra.mxu0 %v595
      %v628 = vpop.f32.mrf.mxu0
      %v629 = vadd.f32 0.0, %v628
      %v630 = vpop.f32.mrf.mxu0
      %631 = vdwg.mxu0
      %632 = vmatpush.bf16.msra.mxu0 0
      %633 = vmatpush.bf16.msra.mxu0 0
      %634 = vmatpush.bf16.msra.mxu0 0
      %635 = vmatpush.bf16.msra.mxu0 0
      %636 = vmatpush.bf16.msra.mxu0 0
      %637 = vmatpush.bf16.msra.mxu0 0
      %638 = vmatpush.bf16.msra.mxu0 0
      %639 = vmatpush.bf16.msra.mxu0 %v604
      %640 = vmatmul.bf16.gmra.mxu0 %v595
      %v641 = vpop.f32.mrf.mxu0
      %v642 = vadd.f32 0.0, %v641
      %v643 = vpop.f32.mrf.mxu0
      %644 = vdwg.mxu0
      %v645 = vadd.f32 %v571, %v616
      %v646 = vadd.f32 %v572, %v629
      %v647 = vadd.f32 %v573, %v642
      %v648 = vld [vmem:[%s274] sm:$0x3f]
      %s649 = scalar_lea.vmem %s1, 20
      %v650 = vld [vmem:[%s649] sm:$0xf]
      %652 = vst [vmem:[#allocation1] ss:$4 sm:$0xff] %v648
      %v653 = vld.sshfl [vmem:[#allocation1] sm:$0xff pattern:$0x73625140]
      %v655 = vld.sshfl [vmem:[#allocation1 + $0x8] sm:$0xff pattern:$0x73625140]
      %v657 = vld.sshfl [vmem:[#allocation1 + $0x10] sm:$0xff pattern:$0x73625140]
      %659 = vrot.lane.b32.xlu0 %v653, 108
      %v660 = vpop.permute.xlu0 %659
      %661 = vrot.lane.b32.xlu0 %v655, 108
      %v662 = vpop.permute.xlu0 %661
      %663 = vrot.lane.b32.xlu0 %v657, 108
      %v664 = vpop.permute.xlu0 %663
      %vm665 = vcmask 883712
      %v666 = vsel %vm665, %v660, %v662
      %v667 = vsel %vm665, %v662, %v664
      %v669 = vsel %vm321, %v650, 0
      %v672 = vsel %vm325, %v666, 0
      %v675 = vsel %vm325, %v667, 0
      %v678 = vsel %vm325, %v664, 0
      %680 = vmatpush.bf16.msra.mxu0 0
      %681 = vmatpush.bf16.msra.mxu0 0
      %682 = vmatpush.bf16.msra.mxu0 0
      %683 = vmatpush.bf16.msra.mxu0 0
      %684 = vmatpush.bf16.msra.mxu0 0
      %685 = vmatpush.bf16.msra.mxu0 0
      %686 = vmatpush.bf16.msra.mxu0 0
      %687 = vmatpush.bf16.msra.mxu0 %v672
      %688 = vmatmul.bf16.gmra.mxu0 %v669
      %v689 = vpop.f32.mrf.mxu0
      %v690 = vadd.f32 0.0, %v689
      %v691 = vpop.f32.mrf.mxu0
      %692 = vdwg.mxu0
      %693 = vmatpush.bf16.msra.mxu0 0
      %694 = vmatpush.bf16.msra.mxu0 0
      %695 = vmatpush.bf16.msra.mxu0 0
      %696 = vmatpush.bf16.msra.mxu0 0
      %697 = vmatpush.bf16.msra.mxu0 0
      %698 = vmatpush.bf16.msra.mxu0 0
      %699 = vmatpush.bf16.msra.mxu0 0
      %700 = vmatpush.bf16.msra.mxu0 %v675
      %701 = vmatmul.bf16.gmra.mxu0 %v669
      %v702 = vpop.f32.mrf.mxu0
      %v703 = vadd.f32 0.0, %v702
      %v704 = vpop.f32.mrf.mxu0
      %705 = vdwg.mxu0
      %706 = vmatpush.bf16.msra.mxu0 0
      %707 = vmatpush.bf16.msra.mxu0 0
      %708 = vmatpush.bf16.msra.mxu0 0
      %709 = vmatpush.bf16.msra.mxu0 0
      %710 = vmatpush.bf16.msra.mxu0 0
      %711 = vmatpush.bf16.msra.mxu0 0
      %712 = vmatpush.bf16.msra.mxu0 0
      %713 = vmatpush.bf16.msra.mxu0 %v678
      %714 = vmatmul.bf16.gmra.mxu0 %v669
      %v715 = vpop.f32.mrf.mxu0
      %v716 = vadd.f32 0.0, %v715
      %v717 = vpop.f32.mrf.mxu0
      %718 = vdwg.mxu0
      %v719 = vadd.f32 %v645, %v690
      %v720 = vadd.f32 %v646, %v703
      %v721 = vadd.f32 %v647, %v716
      %v722 = vld [vmem:[%s274] sm:$0x3f]
      %s723 = scalar_lea.vmem %s1, 24
      %v724 = vld [vmem:[%s723] sm:$0xf]
      %726 = vst [vmem:[#allocation1] ss:$4 sm:$0xff] %v722
      %v727 = vld.sshfl [vmem:[#allocation1] sm:$0xff pattern:$0x73625140]
      %v729 = vld.sshfl [vmem:[#allocation1 + $0x8] sm:$0xff pattern:$0x73625140]
      %v731 = vld.sshfl [vmem:[#allocation1 + $0x10] sm:$0xff pattern:$0x73625140]
      %733 = vrot.lane.b32.xlu0 %v727, 92
      %v734 = vpop.permute.xlu0 %733
      %735 = vrot.lane.b32.xlu0 %v729, 92
      %v736 = vpop.permute.xlu0 %735
      %737 = vrot.lane.b32.xlu0 %v731, 92
      %v738 = vpop.permute.xlu0 %737
      %vm739 = vcmask 752640
      %v740 = vsel %vm739, %v734, %v736
      %v741 = vsel %vm739, %v736, %v738
      %v743 = vsel %vm321, %v724, 0
      %v746 = vsel %vm325, %v740, 0
      %v749 = vsel %vm325, %v741, 0
      %v752 = vsel %vm325, %v738, 0
      %754 = vmatpush.bf16.msra.mxu0 0
      %755 = vmatpush.bf16.msra.mxu0 0
      %756 = vmatpush.bf16.msra.mxu0 0
      %757 = vmatpush.bf16.msra.mxu0 0
      %758 = vmatpush.bf16.msra.mxu0 0
      %759 = vmatpush.bf16.msra.mxu0 0
      %760 = vmatpush.bf16.msra.mxu0 0
      %761 = vmatpush.bf16.msra.mxu0 %v746
      %762 = vmatmul.bf16.gmra.mxu0 %v743
      %v763 = vpop.f32.mrf.mxu0
      %v764 = vadd.f32 0.0, %v763
      %v765 = vpop.f32.mrf.mxu0
      %766 = vdwg.mxu0
      %767 = vmatpush.bf16.msra.mxu0 0
      %768 = vmatpush.bf16.msra.mxu0 0
      %769 = vmatpush.bf16.msra.mxu0 0
      %770 = vmatpush.bf16.msra.mxu0 0
      %771 = vmatpush.bf16.msra.mxu0 0
      %772 = vmatpush.bf16.msra.mxu0 0
      %773 = vmatpush.bf16.msra.mxu0 0
      %774 = vmatpush.bf16.msra.mxu0 %v749
      %775 = vmatmul.bf16.gmra.mxu0 %v743
      %v776 = vpop.f32.mrf.mxu0
      %v777 = vadd.f32 0.0, %v776
      %v778 = vpop.f32.mrf.mxu0
      %779 = vdwg.mxu0
      %780 = vmatpush.bf16.msra.mxu0 0
      %781 = vmatpush.bf16.msra.mxu0 0
      %782 = vmatpush.bf16.msra.mxu0 0
      %783 = vmatpush.bf16.msra.mxu0 0
      %784 = vmatpush.bf16.msra.mxu0 0
      %785 = vmatpush.bf16.msra.mxu0 0
      %786 = vmatpush.bf16.msra.mxu0 0
      %787 = vmatpush.bf16.msra.mxu0 %v752
      %788 = vmatmul.bf16.gmra.mxu0 %v743
      %v789 = vpop.f32.mrf.mxu0
      %v790 = vadd.f32 0.0, %v789
      %v791 = vpop.f32.mrf.mxu0
      %792 = vdwg.mxu0
      %v793 = vadd.f32 %v719, %v764
      %v794 = vadd.f32 %v720, %v777
      %v795 = vadd.f32 %v721, %v790
      %v796 = vld [vmem:[%s274] sm:$0x3f]
      %s797 = scalar_lea.vmem %s1, 28
      %v798 = vld [vmem:[%s797] sm:$0xf]
      %800 = vst [vmem:[#allocation1] ss:$4 sm:$0xff] %v796
      %v801 = vld.sshfl [vmem:[#allocation1] sm:$0xff pattern:$0x73625140]
      %v803 = vld.sshfl [vmem:[#allocation1 + $0x8] sm:$0xff pattern:$0x73625140]
      %v805 = vld.sshfl [vmem:[#allocation1 + $0x10] sm:$0xff pattern:$0x73625140]
      %807 = vrot.lane.b32.xlu0 %v801, 91
      %v808 = vpop.permute.xlu0 %807
      %809 = vrot.lane.b32.xlu0 %v803, 91
      %v810 = vpop.permute.xlu0 %809
      %811 = vrot.lane.b32.xlu0 %v805, 91
      %v812 = vpop.permute.xlu0 %811
      %vm813 = vcmask 744448
      %v814 = vsel %vm813, %v808, %v810
      %v815 = vsel %vm813, %v810, %v812
      %v817 = vsel %vm321, %v798, 0
      %v820 = vsel %vm325, %v814, 0
      %v823 = vsel %vm325, %v815, 0
      %v826 = vsel %vm325, %v812, 0
      %828 = vmatpush.bf16.msra.mxu0 0
      %829 = vmatpush.bf16.msra.mxu0 0
      %830 = vmatpush.bf16.msra.mxu0 0
      %831 = vmatpush.bf16.msra.mxu0 0
      %832 = vmatpush.bf16.msra.mxu0 0
      %833 = vmatpush.bf16.msra.mxu0 0
      %834 = vmatpush.bf16.msra.mxu0 0
      %835 = vmatpush.bf16.msra.mxu0 %v820
      %836 = vmatmul.bf16.gmra.mxu0 %v817
      %v837 = vpop.f32.mrf.mxu0
      %v838 = vadd.f32 0.0, %v837
      %v839 = vpop.f32.mrf.mxu0
      %840 = vdwg.mxu0
      %841 = vmatpush.bf16.msra.mxu0 0
      %842 = vmatpush.bf16.msra.mxu0 0
      %843 = vmatpush.bf16.msra.mxu0 0
      %844 = vmatpush.bf16.msra.mxu0 0
      %845 = vmatpush.bf16.msra.mxu0 0
      %846 = vmatpush.bf16.msra.mxu0 0
      %847 = vmatpush.bf16.msra.mxu0 0
      %848 = vmatpush.bf16.msra.mxu0 %v823
      %849 = vmatmul.bf16.gmra.mxu0 %v817
      %v850 = vpop.f32.mrf.mxu0
      %v851 = vadd.f32 0.0, %v850
      %v852 = vpop.f32.mrf.mxu0
      %853 = vdwg.mxu0
      %854 = vmatpush.bf16.msra.mxu0 0
      %855 = vmatpush.bf16.msra.mxu0 0
      %856 = vmatpush.bf16.msra.mxu0 0
      %857 = vmatpush.bf16.msra.mxu0 0
      %858 = vmatpush.bf16.msra.mxu0 0
      %859 = vmatpush.bf16.msra.mxu0 0
      %860 = vmatpush.bf16.msra.mxu0 0
      %861 = vmatpush.bf16.msra.mxu0 %v826
      %862 = vmatmul.bf16.gmra.mxu0 %v817
      %v863 = vpop.f32.mrf.mxu0
      %v864 = vadd.f32 0.0, %v863
      %v865 = vpop.f32.mrf.mxu0
      %866 = vdwg.mxu0
      %v867 = vadd.f32 %v793, %v838
      %v868 = vadd.f32 %v794, %v851
      %v869 = vadd.f32 %v795, %v864
      %v870 = vld [vmem:[%s274] sm:$0x3f]
      %s871 = scalar_lea.vmem %s1, 32
      %v872 = vld [vmem:[%s871] sm:$0xf]
      %874 = vst [vmem:[#allocation1] ss:$4 sm:$0xff] %v870
      %v875 = vld.sshfl [vmem:[#allocation1] sm:$0xff pattern:$0x73625140]
      %v877 = vld.sshfl [vmem:[#allocation1 + $0x8] sm:$0xff pattern:$0x73625140]
      %v879 = vld.sshfl [vmem:[#allocation1 + $0x10] sm:$0xff pattern:$0x73625140]
      %881 = vrot.lane.b32.xlu0 %v875, 90
      %v882 = vpop.permute.xlu0 %881
      %883 = vrot.lane.b32.xlu0 %v877, 90
      %v884 = vpop.permute.xlu0 %883
      %885 = vrot.lane.b32.xlu0 %v879, 90
      %v886 = vpop.permute.xlu0 %885
      %vm887 = vcmask 736256
      %v888 = vsel %vm887, %v882, %v884
      %v889 = vsel %vm887, %v884, %v886
      %v891 = vsel %vm321, %v872, 0
      %v894 = vsel %vm325, %v888, 0
      %v897 = vsel %vm325, %v889, 0
      %v900 = vsel %vm325, %v886, 0
      %902 = vmatpush.bf16.msra.mxu0 0
      %903 = vmatpush.bf16.msra.mxu0 0
      %904 = vmatpush.bf16.msra.mxu0 0
      %905 = vmatpush.bf16.msra.mxu0 0
      %906 = vmatpush.bf16.msra.mxu0 0
      %907 = vmatpush.bf16.msra.mxu0 0
      %908 = vmatpush.bf16.msra.mxu0 0
      %909 = vmatpush.bf16.msra.mxu0 %v894
      %910 = vmatmul.bf16.gmra.mxu0 %v891
      %v911 = vpop.f32.mrf.mxu0
      %v912 = vadd.f32 0.0, %v911
      %v913 = vpop.f32.mrf.mxu0
      %914 = vdwg.mxu0
      %915 = vmatpush.bf16.msra.mxu0 0
      %916 = vmatpush.bf16.msra.mxu0 0
      %917 = vmatpush.bf16.msra.mxu0 0
      %918 = vmatpush.bf16.msra.mxu0 0
      %919 = vmatpush.bf16.msra.mxu0 0
      %920 = vmatpush.bf16.msra.mxu0 0
      %921 = vmatpush.bf16.msra.mxu0 0
      %922 = vmatpush.bf16.msra.mxu0 %v897
      %923 = vmatmul.bf16.gmra.mxu0 %v891
      %v924 = vpop.f32.mrf.mxu0
      %v925 = vadd.f32 0.0, %v924
      %v926 = vpop.f32.mrf.mxu0
      %927 = vdwg.mxu0
      %928 = vmatpush.bf16.msra.mxu0 0
      %929 = vmatpush.bf16.msra.mxu0 0
      %930 = vmatpush.bf16.msra.mxu0 0
      %931 = vmatpush.bf16.msra.mxu0 0
      %932 = vmatpush.bf16.msra.mxu0 0
      %933 = vmatpush.bf16.msra.mxu0 0
      %934 = vmatpush.bf16.msra.mxu0 0
      %935 = vmatpush.bf16.msra.mxu0 %v900
      %936 = vmatmul.bf16.gmra.mxu0 %v891
      %v937 = vpop.f32.mrf.mxu0
      %v938 = vadd.f32 0.0, %v937
      %v939 = vpop.f32.mrf.mxu0
      %940 = vdwg.mxu0
      %v941 = vadd.f32 %v867, %v912
      %v942 = vadd.f32 %v868, %v925
      %v943 = vadd.f32 %v869, %v938
      %v944 = vpack.c.bf16 %v942, %v941
      %v945 = vpack.c.bf16 %v943, %v943
      %946 = vst [vmem:[%s283] sm:$0xff] %v944
      %vm947 = vcmask 257024
      %948 = vst.msk [vmem:[%s283 + $0x8] sm:$0xf] %vm947, %v945
      %v949 = vld [vmem:[%s2] sm:$0x7]
      %v951 = vperm.slane %v949, 0
      %v952 = vperm.slane %v949, 1
      %v953 = vperm.slane %v949, 2
      %v957 = vmul.f32 %v941, %v951
      %v958 = vmul.f32 %v942, %v952
      %v959 = vmul.f32 %v943, %v953
      %v960 = vadd.f32 %v957, %v958
      %vm961 = vcmask 261120
      %v962 = vsel %vm961, %v959, 0.0
      %v963 = vadd.f32 %v960, %v962
      %964 = vadd.xlane.f32.xlu0 %v963
      %v965 = vpop.xlane.xlu0 %964
      %vm966 = vcmask 7168
      %967 = vst.msk [vmem:[%s291] sm:$0xff] %vm966, %v965
      %v968 = vmul.f32 %v957, %v941
      %v969 = vmul.f32 %v958, %v942
      %v970 = vmul.f32 %v959, %v943
      %v971 = vadd.f32 %v968, %v969
      %v972 = vsel %vm961, %v970, 0.0
      %v973 = vadd.f32 %v971, %v972
      %974 = vadd.xlane.f32.xlu0 %v973
      %v975 = vpop.xlane.xlu0 %974
      %976 = vst.msk [vmem:[%s298] sm:$0xff] %vm966, %v975
      %s977 = smul.u32 3, %s22
      %p978 = scmp.lt.s32.totalorder %s21, 1
      %s979 = scalar_select %p978, %s21, 1
      %p980 = scmp.lt.s32.totalorder %s977, 2
      %s981 = scalar_select %p980, %s977, 2
      %s982 = smul.addr %s979, 3
      %s983 = sadd.s32 %s981, %s982
      %s984 = smul.addr %s983, 4
      %s985 = scalar_lea.vmem %s3, %s984
      %p986 = scmp.lt.s32.totalorder %s21, 1
      %s987 = scalar_select %p986, %s21, 1
      %p988 = scmp.lt.s32.totalorder %s22, 0
      %s989 = scalar_select %p988, %s22, 0
      %s990 = sadd.s32 %s989, %s987
      %s991 = smul.addr %s990, 8
      %s992 = scalar_lea.vmem %s4, %s991
      %p993 = scmp.lt.s32.totalorder %s21, 1
      %s994 = scalar_select %p993, %s21, 1
      %p995 = scmp.lt.s32.totalorder %s22, 0
      %s996 = scalar_select %p995, %s22, 0
      %s997 = sadd.s32 %s996, %s994
      %s998 = smul.addr %s997, 8
      %s999 = scalar_lea.vmem %s5, %s998
      // Predicated region
      $region33: #{conv_block_forward.4} parent=31 // pred_check
        %p1000 = pneg %p119
      $region34: #{conv_block_forward.4} parent=31 // pred_check_branch
        %1002 = sbr.rel (%p1000) target = $region36
      $region35: #{conv_block_forward.4} parent=31 // pred_region
        %s1003 = smul.u32 3, %s22
      $region36: #{conv_block_forward.4} parent=31 // pred_fallthru
        _
      // Predicated region
      $region37: #{conv_block_forward.4} parent=31 // pred_check
        %p1004 = pneg %p147
      $region38: #{conv_block_forward.4} parent=31 // pred_check_branch
        %1006 = sbr.rel (%p1004) target = $region40
      $region39: #{conv_block_forward.4} parent=31 // pred_region
        _
      $region40: #{conv_block_forward.4} parent=31 // pred_fallthru
        _
      // Predicated region
      $region41: #{conv_block_forward.4} parent=31 // pred_check
        %p1007 = pneg %p175
      $region42: #{conv_block_forward.4} parent=31 // pred_check_branch
        %1009 = sbr.rel (%p1007) target = $region44
      $region43: #{conv_block_forward.4} parent=31 // pred_region
        _
      $region44: #{conv_block_forward.4} parent=31 // pred_fallthru
        _
    $region32: #{conv_block_forward.4} parent=5 // pred_fallthru
      _
    %p1010 = scmp.le.s32.totalorder 2, %s12
    // Predicated region
    $region45: #{conv_block_forward.4} parent=5 // pred_check
      %p1011 = pneg %p1010
    $region46: #{conv_block_forward.4} parent=5 // pred_check_branch
      %1013 = sbr.rel (%p1011) target = $region48
    $region47: #{conv_block_forward.4} parent=5 // pred_region
      %s1014 = ssub.s32 %s12, 2
      // Predicated region
      $region49: #{conv_block_forward.4} parent=47 // pred_check
        %p1015 = pneg %p125
      $region50: #{conv_block_forward.4} parent=47 // pred_check_branch
        %1017 = sbr.rel (%p1015) target = $region52
      $region51: #{conv_block_forward.4} parent=47 // pred_region
        %s1018 = smul.u32 3, %s24
        %p1019 = scmp.lt.s32.totalorder %s23, 1
        %s1020 = scalar_select %p1019, %s23, 1
        %p1021 = scmp.lt.s32.totalorder %s1018, 2
        %s1022 = scalar_select %p1021, %s1018, 2
        %s1023 = smul.addr %s1020, 3
        %s1024 = sadd.s32 %s1022, %s1023
        %s1025 = smul.addr %s1024, 4
        %s1026 = scalar_lea.vmem %s3, %s1025
      $region52: #{conv_block_forward.4} parent=47 // pred_fallthru
        _
      // Predicated region
      $region53: #{conv_block_forward.4} parent=47 // pred_check
        %p1027 = pneg %p153
      $region54: #{conv_block_forward.4} parent=47 // pred_check_branch
        %1029 = sbr.rel (%p1027) target = $region56
      $region55: #{conv_block_forward.4} parent=47 // pred_region
        %p1030 = scmp.lt.s32.totalorder %s23, 1
        %s1031 = scalar_select %p1030, %s23, 1
        %p1032 = scmp.lt.s32.totalorder %s24, 0
        %s1033 = scalar_select %p1032, %s24, 0
        %s1034 = sadd.s32 %s1033, %s1031
        %s1035 = smul.addr %s1034, 8
        %s1036 = scalar_lea.vmem %s4, %s1035
      $region56: #{conv_block_forward.4} parent=47 // pred_fallthru
        _
      // Predicated region
      $region57: #{conv_block_forward.4} parent=47 // pred_check
        %p1037 = pneg %p181
      $region58: #{conv_block_forward.4} parent=47 // pred_check_branch
        %1039 = sbr.rel (%p1037) target = $region60
      $region59: #{conv_block_forward.4} parent=47 // pred_region
        %p1040 = scmp.lt.s32.totalorder %s23, 1
        %s1041 = scalar_select %p1040, %s23, 1
        %p1042 = scmp.lt.s32.totalorder %s24, 0
        %s1043 = scalar_select %p1042, %s24, 0
        %s1044 = sadd.s32 %s1043, %s1041
        %s1045 = smul.addr %s1044, 8
        %s1046 = scalar_lea.vmem %s5, %s1045
      $region60: #{conv_block_forward.4} parent=47 // pred_fallthru
        _
    $region48: #{conv_block_forward.4} parent=5 // pred_fallthru
      _
  $region6: #{conv_block_forward.4} parent=0 // loop_footer
    %s16 = sadd.s32 1, %s12
  $region7: #{conv_block_forward.4} parent=0 // loop_footer_branch
    %11 = sbr.rel target = $region3
  $region8: #{conv_block_forward.4} parent=0 // loop_exit
    _

// kernel: conv_block_forward.6
$region0: #{conv_block_forward.6}
  #allocation0 [shape = 'u32[]', space=smem, size = 0x4, offset = 0x4, fixed_abs, tag = 'smem constant byte address 0x4 - core index']
  #allocation1 [shape = 'u32[72,128]{1,0:T(1,128)}', space=vmem, size = 0x9000, scoped, tag = 'internal scratch']
  %s0 = inlined_call_operand.vmem [shape: bf16[2,1,8,342], index: 0, kind: input, shape index: {}]
  %s1 = inlined_call_operand.vmem [shape: bf16[9,8,8], index: 1, kind: input, shape index: {}]
  %s2 = inlined_call_operand.vmem [shape: f32[1,288], index: 2, kind: input, shape index: {}]
  %s3 = inlined_call_operand.vmem [shape: bf16[2,8,288], index: 3, kind: output, shape index: {0}]
  %s4 = inlined_call_operand.vmem [shape: f32[2,1,8,1], index: 4, kind: output, shape index: {1}]
  %s5 = inlined_call_operand.vmem [shape: f32[2,1,8,1], index: 5, kind: output, shape index: {2}]
  %6 = xla_tuple %s3, %s4, %s5
  %s7 = sld [smem:[#allocation0]]
  $region61: #{conv_block_forward.6} parent=0
    _
  %s9 = ssub.s32 1, %s7
  %s10 = scalar_select 0, %s9, %s7
  loop: start=0, step=1, limit=4
  $region2: #{conv_block_forward.6} parent=0 // loop_pre_header
    _
  $region3: #{conv_block_forward.6} parent=0 // loop_header
    %s12 = sphi 0, %s16
    %p13 = scmp.ge.s32.totalorder %s12, 4
    %s19 = sphi 0, %s31
    %s20 = sphi 0, %s27
    %s21 = sphi 0, %s19
    %s22 = sphi 0, %s20
    %s23 = sphi 0, %s21
    %s24 = sphi 0, %s22
    %s36 = sphi 0, %s38
    %s39 = sphi 0, %s36
    %s40 = sphi 0, %s39
    %s56 = sphi 0, %s40
    %s60 = sphi 0, %s60
    %s62 = sphi 0, %s60
    %s63 = sphi 0, %s62
    %s77 = sphi 0, %s63
    %s81 = sphi 0, %s81
    %s83 = sphi 0, %s81
    %s84 = sphi 0, %s83
    %s98 = sphi 0, %s84
    %s106 = sphi 0, %s108
    %s109 = sphi 0, %s106
    %s110 = sphi 0, %s109
    %s126 = sphi 0, %s110
    %s134 = sphi 0, %s136
    %s137 = sphi 0, %s134
    %s138 = sphi 0, %s137
    %s154 = sphi 0, %s138
    %s162 = sphi 0, %s164
    %s165 = sphi 0, %s162
    %s166 = sphi 0, %s165
    %s182 = sphi 0, %s166
  $region4: #{conv_block_forward.6} parent=0 // loop_header_branch
    %15 = sbr.rel (%p13) target = $region8
  $region5: #{conv_block_forward.6} parent=0 // loop_body
    %s17 = ssub.s32 %s12, 1
    %s18 = ssub.s32 %s12, 2
    %s25 = sadd.s32 1, %s20
    %p26 = scmp.ge.s32.totalorder %s25, 1
    %s27 = scalar_select %p26, 0, %s25
    %s28 = sadd.s32 1, %s19
    %s29 = scalar_select %p26, %s28, %s19
    %p30 = scmp.ge.s32.totalorder %s29, 2
    %s31 = scalar_select %p30, 0, %s29
    %s32 = ssub.s32 %s19, %s31
    %s33 = ssub.s32 %s20, %s27
    %s34 = sor.u32 %s32, %s33
    %p35 = scmp.eq.s32.totalorder %s34, 0
    %s37 = sadd.s32 %s36, 1
    %s38 = scalar_select %p35, %s36, %s37
    %p41 = pneg %p35
    %p42 = scmp.eq.s32.totalorder %s12, 1
    %p43 = por %p41, %p42
    %p44 = scmp.ne.s32.totalorder %s36, %s39
    %p45 = scmp.eq.s32.totalorder %s12, 0
    %p46 = por %p44, %p45
    %p47 = scmp.ne.s32.totalorder %s36, %s39
    %p48 = scmp.eq.s32.totalorder %s17, 1
    %p49 = por %p47, %p48
    %p50 = scmp.ne.s32.totalorder %s39, %s40
    %p51 = scmp.eq.s32.totalorder %s17, 0
    %p52 = por %p50, %p51
    %p53 = scmp.ne.s32.totalorder %s39, %s40
    %p54 = scmp.eq.s32.totalorder %s18, 1
    %p55 = por %p53, %p54
    %p57 = scmp.ne.s32.totalorder %s40, %s56
    %p58 = scmp.eq.s32.totalorder %s18, 0
    %p59 = por %p57, %p58
    %s61 = sadd.s32 %s60, 1
    %p64 = scmp.eq.s32.totalorder %s12, 1
    %p65 = scmp.ne.s32.totalorder %s60, %s62
    %p66 = scmp.eq.s32.totalorder %s12, 0
    %p67 = por %p65, %p66
    %p68 = scmp.ne.s32.totalorder %s60, %s62
    %p69 = scmp.eq.s32.totalorder %s17, 1
    %p70 = por %p68, %p69
    %p71 = scmp.ne.s32.totalorder %s62, %s63
    %p72 = scmp.eq.s32.totalorder %s17, 0
    %p73 = por %p71, %p72
    %p74 = scmp.ne.s32.totalorder %s62, %s63
    %p75 = scmp.eq.s32.totalorder %s18, 1
    %p76 = por %p74, %p75
    %p78 = scmp.ne.s32.totalorder %s63, %s77
    %p79 = scmp.eq.s32.totalorder %s18, 0
    %p80 = por %p78, %p79
    %s82 = sadd.s32 %s81, 1
    %p85 = scmp.eq.s32.totalorder %s12, 1
    %p86 = scmp.ne.s32.totalorder %s81, %s83
    %p87 = scmp.eq.s32.totalorder %s12, 0
    %p88 = por %p86, %p87
    %p89 = scmp.ne.s32.totalorder %s81, %s83
    %p90 = scmp.eq.s32.totalorder %s17, 1
    %p91 = por %p89, %p90
    %p92 = scmp.ne.s32.totalorder %s83, %s84
    %p93 = scmp.eq.s32.totalorder %s17, 0
    %p94 = por %p92, %p93
    %p95 = scmp.ne.s32.totalorder %s83, %s84
    %p96 = scmp.eq.s32.totalorder %s18, 1
    %p97 = por %p95, %p96
    %p99 = scmp.ne.s32.totalorder %s84, %s98
    %p100 = scmp.eq.s32.totalorder %s18, 0
    %p101 = por %p99, %p100
    %s102 = ssub.s32 %s19, %s31
    %s103 = ssub.s32 %s20, %s27
    %s104 = sor.u32 %s102, %s103
    %p105 = scmp.eq.s32.totalorder %s104, 0
    %s107 = sadd.s32 %s106, 1
    %s108 = scalar_select %p105, %s106, %s107
    %p111 = pneg %p105
    %p112 = scmp.eq.s32.totalorder %s12, 1
    %p113 = por %p111, %p112
    %p114 = scmp.ne.s32.totalorder %s106, %s109
    %p115 = scmp.eq.s32.totalorder %s12, 0
    %p116 = por %p114, %p115
    %p117 = scmp.ne.s32.totalorder %s106, %s109
    %p118 = scmp.eq.s32.totalorder %s17, 1
    %p119 = por %p117, %p118
    %p120 = scmp.ne.s32.totalorder %s109, %s110
    %p121 = scmp.eq.s32.totalorder %s17, 0
    %p122 = por %p120, %p121
    %p123 = scmp.ne.s32.totalorder %s109, %s110
    %p124 = scmp.eq.s32.totalorder %s18, 1
    %p125 = por %p123, %p124
    %p127 = scmp.ne.s32.totalorder %s110, %s126
    %p128 = scmp.eq.s32.totalorder %s18, 0
    %p129 = por %p127, %p128
    %s130 = ssub.s32 %s19, %s31
    %s131 = ssub.s32 %s20, %s27
    %s132 = sor.u32 %s130, %s131
    %p133 = scmp.eq.s32.totalorder %s132, 0
    %s135 = sadd.s32 %s134, 1
    %s136 = scalar_select %p133, %s134, %s135
    %p139 = pneg %p133
    %p140 = scmp.eq.s32.totalorder %s12, 1
    %p141 = por %p139, %p140
    %p142 = scmp.ne.s32.totalorder %s134, %s137
    %p143 = scmp.eq.s32.totalorder %s12, 0
    %p144 = por %p142, %p143
    %p145 = scmp.ne.s32.totalorder %s134, %s137
    %p146 = scmp.eq.s32.totalorder %s17, 1
    %p147 = por %p145, %p146
    %p148 = scmp.ne.s32.totalorder %s137, %s138
    %p149 = scmp.eq.s32.totalorder %s17, 0
    %p150 = por %p148, %p149
    %p151 = scmp.ne.s32.totalorder %s137, %s138
    %p152 = scmp.eq.s32.totalorder %s18, 1
    %p153 = por %p151, %p152
    %p155 = scmp.ne.s32.totalorder %s138, %s154
    %p156 = scmp.eq.s32.totalorder %s18, 0
    %p157 = por %p155, %p156
    %s158 = ssub.s32 %s19, %s31
    %s159 = ssub.s32 %s20, %s27
    %s160 = sor.u32 %s158, %s159
    %p161 = scmp.eq.s32.totalorder %s160, 0
    %s163 = sadd.s32 %s162, 1
    %s164 = scalar_select %p161, %s162, %s163
    %p167 = pneg %p161
    %p168 = scmp.eq.s32.totalorder %s12, 1
    %p169 = por %p167, %p168
    %p170 = scmp.ne.s32.totalorder %s162, %s165
    %p171 = scmp.eq.s32.totalorder %s12, 0
    %p172 = por %p170, %p171
    %p173 = scmp.ne.s32.totalorder %s162, %s165
    %p174 = scmp.eq.s32.totalorder %s17, 1
    %p175 = por %p173, %p174
    %p176 = scmp.ne.s32.totalorder %s165, %s166
    %p177 = scmp.eq.s32.totalorder %s17, 0
    %p178 = por %p176, %p177
    %p179 = scmp.ne.s32.totalorder %s165, %s166
    %p180 = scmp.eq.s32.totalorder %s18, 1
    %p181 = por %p179, %p180
    %p183 = scmp.ne.s32.totalorder %s166, %s182
    %p184 = scmp.eq.s32.totalorder %s18, 0
    %p185 = por %p183, %p184
    %p186 = scmp.le.s32.totalorder 1, %s12
    %p187 = scmp.lt.s32.totalorder %s12, 3
    %p188 = pnand %p186, %p187
    %p189 = pneg %p188
    // Predicated region
    $region9: #{conv_block_forward.6} parent=5 // pred_check
      _
    $region10: #{conv_block_forward.6} parent=5 // pred_check_branch
      %191 = sbr.rel (%p188) target = $region12
    $region11: #{conv_block_forward.6} parent=5 // pred_region
      %s192 = ssub.s32 %s12, 1
      // Predicated region
      $region13: #{conv_block_forward.6} parent=11 // pred_check
        %p193 = pneg %p73
      $region14: #{conv_block_forward.6} parent=11 // pred_check_branch
        %195 = sbr.rel (%p193) target = $region16
      $region15: #{conv_block_forward.6} parent=11 // pred_region
        _
      $region16: #{conv_block_forward.6} parent=11 // pred_fallthru
        _
      // Predicated region
      $region17: #{conv_block_forward.6} parent=11 // pred_check
        %p196 = pneg %p94
      $region18: #{conv_block_forward.6} parent=11 // pred_check_branch
        %198 = sbr.rel (%p196) target = $region20
      $region19: #{conv_block_forward.6} parent=11 // pred_region
        _
      $region20: #{conv_block_forward.6} parent=11 // pred_fallthru
        _
    $region12: #{conv_block_forward.6} parent=5 // pred_fallthru
      _
    %p199 = scmp.lt.s32.totalorder %s12, 2
    // Predicated region
    $region21: #{conv_block_forward.6} parent=5 // pred_check
      %p200 = pneg %p199
    $region22: #{conv_block_forward.6} parent=5 // pred_check_branch
      %202 = sbr.rel (%p200) target = $region24
    $region23: #{conv_block_forward.6} parent=5 // pred_region
      // Predicated region
      $region25: #{conv_block_forward.6} parent=23 // pred_check
        %p203 = pneg %p46
      $region26: #{conv_block_forward.6} parent=23 // pred_check_branch
        %205 = sbr.rel (%p203) target = $region28
      $region27: #{conv_block_forward.6} parent=23 // pred_region
        %p206 = scmp.lt.s32.totalorder %s19, 1
        %s207 = scalar_select %p206, %s19, 1
        %p208 = scmp.lt.s32.totalorder %s20, 0
        %s209 = scalar_select %p208, %s20, 0
        %s210 = smul.addr %s209, 3
        %s211 = smul.addr %s207, 3
        %s212 = sadd.s32 %s210, %s211
        %s213 = smul.addr %s212, 4
        %s214 = scalar_lea.vmem %s0, %s213
      $region28: #{conv_block_forward.6} parent=23 // pred_fallthru
        _
    $region24: #{conv_block_forward.6} parent=5 // pred_fallthru
      _
    %p215 = scmp.le.s32.totalorder 1, %s12
    %p216 = scmp.lt.s32.totalorder %s12, 3
    %p217 = pnand %p215, %p216
    %p218 = pneg %p217
    // Predicated region
    $region29: #{conv_block_forward.6} parent=5 // pred_check
      _
    $region30: #{conv_block_forward.6} parent=5 // pred_check_branch
      %220 = sbr.rel (%p217) target = $region32
    $region31: #{conv_block_forward.6} parent=5 // pred_region
      %s221 = ssub.s32 %s12, 1
      %p222 = scmp.lt.s32.totalorder %s21, 1
      %s223 = scalar_select %p222, %s21, 1
      %p224 = scmp.lt.s32.totalorder %s22, 0
      %s225 = scalar_select %p224, %s22, 0
      %s226 = smul.addr %s225, 3
      %s227 = smul.addr %s223, 3
      %s228 = sadd.s32 %s226, %s227
      %s229 = smul.addr %s228, 4
      %s230 = scalar_lea.vmem %s0, %s229
      %p231 = pneg %p52
      %p232 = pneg %p49
      %p233 = pneg %p73
      %p234 = pneg %p70
      %p235 = pneg %p94
      %p236 = pneg %p91
      %p237 = pneg %p122
      %p238 = pneg %p119
      %s239 = smul.u32 3, %s22
      %p240 = scmp.lt.s32.totalorder %s21, 1
      %s241 = scalar_select %p240, %s21, 1
      %p242 = scmp.lt.s32.totalorder %s239, 2
      %s243 = scalar_select %p242, %s239, 2
      %s244 = smul.addr %s241, 3
      %s245 = sadd.s32 %s243, %s244
      %s246 = smul.addr %s245, 4
      %s247 = scalar_lea.vmem %s3, %s246
      %p248 = pneg %p150
      %p249 = pneg %p147
      %p250 = scmp.lt.s32.totalorder %s21, 1
      %s251 = scalar_select %p250, %s21, 1
      %p252 = scmp.lt.s32.totalorder %s22, 0
      %s253 = scalar_select %p252, %s22, 0
      %s254 = sadd.s32 %s253, %s251
      %s255 = smul.addr %s254, 8
      %s256 = scalar_lea.vmem %s4, %s255
      %p257 = pneg %p178
      %p258 = pneg %p175
      %p259 = scmp.lt.s32.totalorder %s21, 1
      %s260 = scalar_select %p259, %s21, 1
      %p261 = scmp.lt.s32.totalorder %s22, 0
      %s262 = scalar_select %p261, %s22, 0
      %s263 = sadd.s32 %s262, %s260
      %s264 = smul.addr %s263, 8
      %s265 = scalar_lea.vmem %s5, %s264
      %p266 = scmp.lt.s32.totalorder %s21, 1
      %s267 = scalar_select %p266, %s21, 1
      %p268 = scmp.lt.s32.totalorder %s22, 0
      %s269 = scalar_select %p268, %s22, 0
      %s270 = smul.addr %s269, 3
      %s271 = smul.addr %s267, 3
      %s272 = sadd.s32 %s270, %s271
      %s273 = smul.addr %s272, 4
      %s274 = scalar_lea.vmem %s0, %s273
      %s275 = smul.u32 3, %s22
      %p276 = scmp.lt.s32.totalorder %s21, 1
      %s277 = scalar_select %p276, %s21, 1
      %p278 = scmp.lt.s32.totalorder %s275, 2
      %s279 = scalar_select %p278, %s275, 2
      %s280 = smul.addr %s277, 3
      %s281 = sadd.s32 %s279, %s280
      %s282 = smul.addr %s281, 4
      %s283 = scalar_lea.vmem %s3, %s282
      %s284 = smul.u32 3, %s22
      %p285 = scmp.lt.s32.totalorder %s21, 1
      %s286 = scalar_select %p285, %s21, 1
      %p287 = scmp.lt.s32.totalorder %s22, 0
      %s288 = scalar_select %p287, %s22, 0
      %s289 = sadd.s32 %s288, %s286
      %s290 = smul.addr %s289, 8
      %s291 = scalar_lea.vmem %s4, %s290
      %p292 = scmp.lt.s32.totalorder %s21, 1
      %s293 = scalar_select %p292, %s21, 1
      %p294 = scmp.lt.s32.totalorder %s22, 0
      %s295 = scalar_select %p294, %s22, 0
      %s296 = sadd.s32 %s295, %s293
      %s297 = smul.addr %s296, 8
      %s298 = scalar_lea.vmem %s5, %s297
      %v300 = vld [vmem:[%s274] sm:$0xff]
      %v301 = vld [vmem:[%s274 + $0x8] sm:$0xf]
      %v302 = vld [vmem:[%s1] sm:$0xf]
      %s303 = scalar_lea.vmem %s1, 4
      %v304 = vld [vmem:[%s303] sm:$0xf]
      %v307 = vunpack.c.l.b16 %v300
      %v308 = vunpack.c.h.b16 %v300
      %v309 = vunpack.c.l.b16 %v301
      %v310 = vpack.c.b16 %v307, %v307
      %v311 = vpack.c.b16 %v308, %v308
      %v312 = vpack.c.b16 %v309, %v309
      %313 = vrot.lane.b32.xlu0 %v310, 127
      %v314 = vpop.permute.xlu0 %313
      %315 = vrot.lane.b32.xlu0 %v311, 127
      %v316 = vpop.permute.xlu0 %315
      %317 = vrot.lane.b32.xlu0 %v312, 127
      %v318 = vpop.permute.xlu0 %317
      %vm319 = vcmask 1039360
      %v320 = vsel %vm319, %v314, %v316
      %v321 = vsel %vm319, %v316, %v318
      %vm322 = vcmask 64512
      %v324 = vsel %vm322, %v304, 0
      %vm326 = vcmask 1043456
      %v328 = vsel %vm326, %v320, 0
      %v331 = vsel %vm326, %v321, 0
      %v334 = vsel %vm326, %v318, 0
      %336 = vmatpush.bf16.msra.mxu0 0
      %337 = vmatpush.bf16.msra.mxu0 0
      %338 = vmatpush.bf16.msra.mxu0 0
      %339 = vmatpush.bf16.msra.mxu0 0
      %340 = vmatpush.bf16.msra.mxu0 0
      %341 = vmatpush.bf16.msra.mxu0 0
      %342 = vmatpush.bf16.msra.mxu0 0
      %343 = vmatpush.bf16.msra.mxu0 %v328
      %344 = vmatmul.bf16.gmra.mxu0 %v324
      %v345 = vpop.f32.mrf.mxu0
      %v346 = vadd.f32 0.0, %v345
      %v347 = vpop.f32.mrf.mxu0
      %348 = vdwg.mxu0
      %349 = vmatpush.bf16.msra.mxu0 0
      %350 = vmatpush.bf16.msra.mxu0 0
      %351 = vmatpush.bf16.msra.mxu0 0
      %352 = vmatpush.bf16.msra.mxu0 0
      %353 = vmatpush.bf16.msra.mxu0 0
      %354 = vmatpush.bf16.msra.mxu0 0
      %355 = vmatpush.bf16.msra.mxu0 0
      %356 = vmatpush.bf16.msra.mxu0 %v331
      %357 = vmatmul.bf16.gmra.mxu0 %v324
      %v358 = vpop.f32.mrf.mxu0
      %v359 = vadd.f32 0.0, %v358
      %v360 = vpop.f32.mrf.mxu0
      %361 = vdwg.mxu0
      %362 = vmatpush.bf16.msra.mxu0 0
      %363 = vmatpush.bf16.msra.mxu0 0
      %364 = vmatpush.bf16.msra.mxu0 0
      %365 = vmatpush.bf16.msra.mxu0 0
      %366 = vmatpush.bf16.msra.mxu0 0
      %367 = vmatpush.bf16.msra.mxu0 0
      %368 = vmatpush.bf16.msra.mxu0 0
      %369 = vmatpush.bf16.msra.mxu0 %v334
      %370 = vmatmul.bf16.gmra.mxu0 %v324
      %v371 = vpop.f32.mrf.mxu0
      %v372 = vadd.f32 0.0, %v371
      %v373 = vpop.f32.mrf.mxu0
      %374 = vdwg.mxu0
      %v376 = vsel %vm322, %v302, 0
      %v379 = vsel %vm326, %v310, 0
      %v382 = vsel %vm326, %v311, 0
      %v385 = vsel %vm326, %v312, 0
      %387 = vmatpush.bf16.msra.mxu0 0
      %388 = vmatpush.bf16.msra.mxu0 0
      %389 = vmatpush.bf16.msra.mxu0 0
      %390 = vmatpush.bf16.msra.mxu0 0
      %391 = vmatpush.bf16.msra.mxu0 0
      %392 = vmatpush.bf16.msra.mxu0 0
      %393 = vmatpush.bf16.msra.mxu0 0
      %394 = vmatpush.bf16.msra.mxu0 %v379
      %395 = vmatmul.bf16.gmra.mxu0 %v376
      %v396 = vpop.f32.mrf.mxu0
      %v397 = vadd.f32 %v346, %v396
      %v398 = vpop.f32.mrf.mxu0
      %399 = vdwg.mxu0
      %400 = vmatpush.bf16.msra.mxu0 0
      %401 = vmatpush.bf16.msra.mxu0 0
      %402 = vmatpush.bf16.msra.mxu0 0
      %403 = vmatpush.bf16.msra.mxu0 0
      %404 = vmatpush.bf16.msra.mxu0 0
      %405 = vmatpush.bf16.msra.mxu0 0
      %406 = vmatpush.bf16.msra.mxu0 0
      %407 = vmatpush.bf16.msra.mxu0 %v382
      %408 = vmatmul.bf16.gmra.mxu0 %v376
      %v409 = vpop.f32.mrf.mxu0
      %v410 = vadd.f32 %v359, %v409
      %v411 = vpop.f32.mrf.mxu0
      %412 = vdwg.mxu0
      %413 = vmatpush.bf16.msra.mxu0 0
      %414 = vmatpush.bf16.msra.mxu0 0
      %415 = vmatpush.bf16.msra.mxu0 0
      %416 = vmatpush.bf16.msra.mxu0 0
      %417 = vmatpush.bf16.msra.mxu0 0
      %418 = vmatpush.bf16.msra.mxu0 0
      %419 = vmatpush.bf16.msra.mxu0 0
      %420 = vmatpush.bf16.msra.mxu0 %v385
      %421 = vmatmul.bf16.gmra.mxu0 %v376
      %v422 = vpop.f32.mrf.mxu0
      %v423 = vadd.f32 %v372, %v422
      %v424 = vpop.f32.mrf.mxu0
      %425 = vdwg.mxu0
      %s426 = scalar_lea.vmem %s1, 8
      %v427 = vld [vmem:[%s426] sm:$0xf]
      %428 = vrot.lane.b32.xlu0 %v310, 126
      %v429 = vpop.permute.xlu0 %428
      %430 = vrot.lane.b32.xlu0 %v311, 126
      %v431 = vpop.permute.xlu0 %430
      %432 = vrot.lane.b32.xlu0 %v312, 126
      %v433 = vpop.permute.xlu0 %432
      %vm434 = vcmask 1031168
      %v435 = vsel %vm434, %v429, %v431
      %v436 = vsel %vm434, %v431, %v433
      %v438 = vsel %vm322, %v427, 0
      %v441 = vsel %vm326, %v435, 0
      %v444 = vsel %vm326, %v436, 0
      %v447 = vsel %vm326, %v433, 0
      %449 = vmatpush.bf16.msra.mxu0 0
      %450 = vmatpush.bf16.msra.mxu0 0
      %451 = vmatpush.bf16.msra.mxu0 0
      %452 = vmatpush.bf16.msra.mxu0 0
      %453 = vmatpush.bf16.msra.mxu0 0
      %454 = vmatpush.bf16.msra.mxu0 0
      %455 = vmatpush.bf16.msra.mxu0 0
      %456 = vmatpush.bf16.msra.mxu0 %v441
      %457 = vmatmul.bf16.gmra.mxu0 %v438
      %v458 = vpop.f32.mrf.mxu0
      %v459 = vadd.f32 0.0, %v458
      %v460 = vpop.f32.mrf.mxu0
      %461 = vdwg.mxu0
      %462 = vmatpush.bf16.msra.mxu0 0
      %463 = vmatpush.bf16.msra.mxu0 0
      %464 = vmatpush.bf16.msra.mxu0 0
      %465 = vmatpush.bf16.msra.mxu0 0
      %466 = vmatpush.bf16.msra.mxu0 0
      %467 = vmatpush.bf16.msra.mxu0 0
      %468 = vmatpush.bf16.msra.mxu0 0
      %469 = vmatpush.bf16.msra.mxu0 %v444
      %470 = vmatmul.bf16.gmra.mxu0 %v438
      %v471 = vpop.f32.mrf.mxu0
      %v472 = vadd.f32 0.0, %v471
      %v473 = vpop.f32.mrf.mxu0
      %474 = vdwg.mxu0
      %475 = vmatpush.bf16.msra.mxu0 0
      %476 = vmatpush.bf16.msra.mxu0 0
      %477 = vmatpush.bf16.msra.mxu0 0
      %478 = vmatpush.bf16.msra.mxu0 0
      %479 = vmatpush.bf16.msra.mxu0 0
      %480 = vmatpush.bf16.msra.mxu0 0
      %481 = vmatpush.bf16.msra.mxu0 0
      %482 = vmatpush.bf16.msra.mxu0 %v447
      %483 = vmatmul.bf16.gmra.mxu0 %v438
      %v484 = vpop.f32.mrf.mxu0
      %v485 = vadd.f32 0.0, %v484
      %v486 = vpop.f32.mrf.mxu0
      %487 = vdwg.mxu0
      %v488 = vadd.f32 %v397, %v459
      %v489 = vadd.f32 %v410, %v472
      %v490 = vadd.f32 %v423, %v485
      %s491 = scalar_lea.vmem %s1, 12
      %v492 = vld [vmem:[%s491] sm:$0xf]
      %493 = vrot.lane.b32.xlu0 %v310, 110
      %v494 = vpop.permute.xlu0 %493
      %495 = vrot.lane.b32.xlu0 %v311, 110
      %v496 = vpop.permute.xlu0 %495
      %497 = vrot.lane.b32.xlu0 %v312, 110
      %v498 = vpop.permute.xlu0 %497
      %vm499 = vcmask 900096
      %v500 = vsel %vm499, %v494, %v496
      %v501 = vsel %vm499, %v496, %v498
      %v503 = vsel %vm322, %v492, 0
      %v506 = vsel %vm326, %v500, 0
      %v509 = vsel %vm326, %v501, 0
      %v512 = vsel %vm326, %v498, 0
      %514 = vmatpush.bf16.msra.mxu0 0
      %515 = vmatpush.bf16.msra.mxu0 0
      %516 = vmatpush.bf16.msra.mxu0 0
      %517 = vmatpush.bf16.msra.mxu0 0
      %518 = vmatpush.bf16.msra.mxu0 0
      %519 = vmatpush.bf16.msra.mxu0 0
      %520 = vmatpush.bf16.msra.mxu0 0
      %521 = vmatpush.bf16.msra.mxu0 %v506
      %522 = vmatmul.bf16.gmra.mxu0 %v503
      %v523 = vpop.f32.mrf.mxu0
      %v524 = vadd.f32 0.0, %v523
      %v525 = vpop.f32.mrf.mxu0
      %526 = vdwg.mxu0
      %527 = vmatpush.bf16.msra.mxu0 0
      %528 = vmatpush.bf16.msra.mxu0 0
      %529 = vmatpush.bf16.msra.mxu0 0
      %530 = vmatpush.bf16.msra.mxu0 0
      %531 = vmatpush.bf16.msra.mxu0 0
      %532 = vmatpush.bf16.msra.mxu0 0
      %533 = vmatpush.bf16.msra.mxu0 0
      %534 = vmatpush.bf16.msra.mxu0 %v509
      %535 = vmatmul.bf16.gmra.mxu0 %v503
      %v536 = vpop.f32.mrf.mxu0
      %v537 = vadd.f32 0.0, %v536
      %v538 = vpop.f32.mrf.mxu0
      %539 = vdwg.mxu0
      %540 = vmatpush.bf16.msra.mxu0 0
      %541 = vmatpush.bf16.msra.mxu0 0
      %542 = vmatpush.bf16.msra.mxu0 0
      %543 = vmatpush.bf16.msra.mxu0 0
      %544 = vmatpush.bf16.msra.mxu0 0
      %545 = vmatpush.bf16.msra.mxu0 0
      %546 = vmatpush.bf16.msra.mxu0 0
      %547 = vmatpush.bf16.msra.mxu0 %v512
      %548 = vmatmul.bf16.gmra.mxu0 %v503
      %v549 = vpop.f32.mrf.mxu0
      %v550 = vadd.f32 0.0, %v549
      %v551 = vpop.f32.mrf.mxu0
      %552 = vdwg.mxu0
      %v553 = vadd.f32 %v488, %v524
      %v554 = vadd.f32 %v489, %v537
      %v555 = vadd.f32 %v490, %v550
      %s556 = scalar_lea.vmem %s1, 16
      %v557 = vld [vmem:[%s556] sm:$0xf]
      %558 = vrot.lane.b32.xlu0 %v310, 109
      %v559 = vpop.permute.xlu0 %558
      %560 = vrot.lane.b32.xlu0 %v311, 109
      %v561 = vpop.permute.xlu0 %560
      %562 = vrot.lane.b32.xlu0 %v312, 109
      %v563 = vpop.permute.xlu0 %562
      %vm564 = vcmask 891904
      %v565 = vsel %vm564, %v559, %v561
      %v566 = vsel %vm564, %v561, %v563
      %v568 = vsel %vm322, %v557, 0
      %v571 = vsel %vm326, %v565, 0
      %v574 = vsel %vm326, %v566, 0
      %v577 = vsel %vm326, %v563, 0
      %579 = vmatpush.bf16.msra.mxu0 0
      %580 = vmatpush.bf16.msra.mxu0 0
      %581 = vmatpush.bf16.msra.mxu0 0
      %582 = vmatpush.bf16.msra.mxu0 0
      %583 = vmatpush.bf16.msra.mxu0 0
      %584 = vmatpush.bf16.msra.mxu0 0
      %585 = vmatpush.bf16.msra.mxu0 0
      %586 = vmatpush.bf16.msra.mxu0 %v571
      %587 = vmatmul.bf16.gmra.mxu0 %v568
      %v588 = vpop.f32.mrf.mxu0
      %v589 = vadd.f32 0.0, %v588
      %v590 = vpop.f32.mrf.mxu0
      %591 = vdwg.mxu0
      %592 = vmatpush.bf16.msra.mxu0 0
      %593 = vmatpush.bf16.msra.mxu0 0
      %594 = vmatpush.bf16.msra.mxu0 0
      %595 = vmatpush.bf16.msra.mxu0 0
      %596 = vmatpush.bf16.msra.mxu0 0
      %597 = vmatpush.bf16.msra.mxu0 0
      %598 = vmatpush.bf16.msra.mxu0 0
      %599 = vmatpush.bf16.msra.mxu0 %v574
      %600 = vmatmul.bf16.gmra.mxu0 %v568
      %v601 = vpop.f32.mrf.mxu0
      %v602 = vadd.f32 0.0, %v601
      %v603 = vpop.f32.mrf.mxu0
      %604 = vdwg.mxu0
      %605 = vmatpush.bf16.msra.mxu0 0
      %606 = vmatpush.bf16.msra.mxu0 0
      %607 = vmatpush.bf16.msra.mxu0 0
      %608 = vmatpush.bf16.msra.mxu0 0
      %609 = vmatpush.bf16.msra.mxu0 0
      %610 = vmatpush.bf16.msra.mxu0 0
      %611 = vmatpush.bf16.msra.mxu0 0
      %612 = vmatpush.bf16.msra.mxu0 %v577
      %613 = vmatmul.bf16.gmra.mxu0 %v568
      %v614 = vpop.f32.mrf.mxu0
      %v615 = vadd.f32 0.0, %v614
      %v616 = vpop.f32.mrf.mxu0
      %617 = vdwg.mxu0
      %v618 = vadd.f32 %v553, %v589
      %v619 = vadd.f32 %v554, %v602
      %v620 = vadd.f32 %v555, %v615
      %s621 = scalar_lea.vmem %s1, 20
      %v622 = vld [vmem:[%s621] sm:$0xf]
      %623 = vrot.lane.b32.xlu0 %v310, 108
      %v624 = vpop.permute.xlu0 %623
      %625 = vrot.lane.b32.xlu0 %v311, 108
      %v626 = vpop.permute.xlu0 %625
      %627 = vrot.lane.b32.xlu0 %v312, 108
      %v628 = vpop.permute.xlu0 %627
      %vm629 = vcmask 883712
      %v630 = vsel %vm629, %v624, %v626
      %v631 = vsel %vm629, %v626, %v628
      %v633 = vsel %vm322, %v622, 0
      %v636 = vsel %vm326, %v630, 0
      %v639 = vsel %vm326, %v631, 0
      %v642 = vsel %vm326, %v628, 0
      %644 = vmatpush.bf16.msra.mxu0 0
      %645 = vmatpush.bf16.msra.mxu0 0
      %646 = vmatpush.bf16.msra.mxu0 0
      %647 = vmatpush.bf16.msra.mxu0 0
      %648 = vmatpush.bf16.msra.mxu0 0
      %649 = vmatpush.bf16.msra.mxu0 0
      %650 = vmatpush.bf16.msra.mxu0 0
      %651 = vmatpush.bf16.msra.mxu0 %v636
      %652 = vmatmul.bf16.gmra.mxu0 %v633
      %v653 = vpop.f32.mrf.mxu0
      %v654 = vadd.f32 0.0, %v653
      %v655 = vpop.f32.mrf.mxu0
      %656 = vdwg.mxu0
      %657 = vmatpush.bf16.msra.mxu0 0
      %658 = vmatpush.bf16.msra.mxu0 0
      %659 = vmatpush.bf16.msra.mxu0 0
      %660 = vmatpush.bf16.msra.mxu0 0
      %661 = vmatpush.bf16.msra.mxu0 0
      %662 = vmatpush.bf16.msra.mxu0 0
      %663 = vmatpush.bf16.msra.mxu0 0
      %664 = vmatpush.bf16.msra.mxu0 %v639
      %665 = vmatmul.bf16.gmra.mxu0 %v633
      %v666 = vpop.f32.mrf.mxu0
      %v667 = vadd.f32 0.0, %v666
      %v668 = vpop.f32.mrf.mxu0
      %669 = vdwg.mxu0
      %670 = vmatpush.bf16.msra.mxu0 0
      %671 = vmatpush.bf16.msra.mxu0 0
      %672 = vmatpush.bf16.msra.mxu0 0
      %673 = vmatpush.bf16.msra.mxu0 0
      %674 = vmatpush.bf16.msra.mxu0 0
      %675 = vmatpush.bf16.msra.mxu0 0
      %676 = vmatpush.bf16.msra.mxu0 0
      %677 = vmatpush.bf16.msra.mxu0 %v642
      %678 = vmatmul.bf16.gmra.mxu0 %v633
      %v679 = vpop.f32.mrf.mxu0
      %v680 = vadd.f32 0.0, %v679
      %v681 = vpop.f32.mrf.mxu0
      %682 = vdwg.mxu0
      %v683 = vadd.f32 %v618, %v654
      %v684 = vadd.f32 %v619, %v667
      %v685 = vadd.f32 %v620, %v680
      %s686 = scalar_lea.vmem %s1, 24
      %v687 = vld [vmem:[%s686] sm:$0xf]
      %688 = vrot.lane.b32.xlu0 %v310, 92
      %v689 = vpop.permute.xlu0 %688
      %690 = vrot.lane.b32.xlu0 %v311, 92
      %v691 = vpop.permute.xlu0 %690
      %692 = vrot.lane.b32.xlu0 %v312, 92
      %v693 = vpop.permute.xlu0 %692
      %vm694 = vcmask 752640
      %v695 = vsel %vm694, %v689, %v691
      %v696 = vsel %vm694, %v691, %v693
      %v698 = vsel %vm322, %v687, 0
      %v701 = vsel %vm326, %v695, 0
      %v704 = vsel %vm326, %v696, 0
      %v707 = vsel %vm326, %v693, 0
      %709 = vmatpush.bf16.msra.mxu0 0
      %710 = vmatpush.bf16.msra.mxu0 0
      %711 = vmatpush.bf16.msra.mxu0 0
      %712 = vmatpush.bf16.msra.mxu0 0
      %713 = vmatpush.bf16.msra.mxu0 0
      %714 = vmatpush.bf16.msra.mxu0 0
      %715 = vmatpush.bf16.msra.mxu0 0
      %716 = vmatpush.bf16.msra.mxu0 %v701
      %717 = vmatmul.bf16.gmra.mxu0 %v698
      %v718 = vpop.f32.mrf.mxu0
      %v719 = vadd.f32 0.0, %v718
      %v720 = vpop.f32.mrf.mxu0
      %721 = vdwg.mxu0
      %722 = vmatpush.bf16.msra.mxu0 0
      %723 = vmatpush.bf16.msra.mxu0 0
      %724 = vmatpush.bf16.msra.mxu0 0
      %725 = vmatpush.bf16.msra.mxu0 0
      %726 = vmatpush.bf16.msra.mxu0 0
      %727 = vmatpush.bf16.msra.mxu0 0
      %728 = vmatpush.bf16.msra.mxu0 0
      %729 = vmatpush.bf16.msra.mxu0 %v704
      %730 = vmatmul.bf16.gmra.mxu0 %v698
      %v731 = vpop.f32.mrf.mxu0
      %v732 = vadd.f32 0.0, %v731
      %v733 = vpop.f32.mrf.mxu0
      %734 = vdwg.mxu0
      %735 = vmatpush.bf16.msra.mxu0 0
      %736 = vmatpush.bf16.msra.mxu0 0
      %737 = vmatpush.bf16.msra.mxu0 0
      %738 = vmatpush.bf16.msra.mxu0 0
      %739 = vmatpush.bf16.msra.mxu0 0
      %740 = vmatpush.bf16.msra.mxu0 0
      %741 = vmatpush.bf16.msra.mxu0 0
      %742 = vmatpush.bf16.msra.mxu0 %v707
      %743 = vmatmul.bf16.gmra.mxu0 %v698
      %v744 = vpop.f32.mrf.mxu0
      %v745 = vadd.f32 0.0, %v744
      %v746 = vpop.f32.mrf.mxu0
      %747 = vdwg.mxu0
      %v748 = vadd.f32 %v683, %v719
      %v749 = vadd.f32 %v684, %v732
      %v750 = vadd.f32 %v685, %v745
      %s751 = scalar_lea.vmem %s1, 28
      %v752 = vld [vmem:[%s751] sm:$0xf]
      %753 = vrot.lane.b32.xlu0 %v310, 91
      %v754 = vpop.permute.xlu0 %753
      %755 = vrot.lane.b32.xlu0 %v311, 91
      %v756 = vpop.permute.xlu0 %755
      %757 = vrot.lane.b32.xlu0 %v312, 91
      %v758 = vpop.permute.xlu0 %757
      %vm759 = vcmask 744448
      %v760 = vsel %vm759, %v754, %v756
      %v761 = vsel %vm759, %v756, %v758
      %v763 = vsel %vm322, %v752, 0
      %v766 = vsel %vm326, %v760, 0
      %v769 = vsel %vm326, %v761, 0
      %v772 = vsel %vm326, %v758, 0
      %774 = vmatpush.bf16.msra.mxu0 0
      %775 = vmatpush.bf16.msra.mxu0 0
      %776 = vmatpush.bf16.msra.mxu0 0
      %777 = vmatpush.bf16.msra.mxu0 0
      %778 = vmatpush.bf16.msra.mxu0 0
      %779 = vmatpush.bf16.msra.mxu0 0
      %780 = vmatpush.bf16.msra.mxu0 0
      %781 = vmatpush.bf16.msra.mxu0 %v766
      %782 = vmatmul.bf16.gmra.mxu0 %v763
      %v783 = vpop.f32.mrf.mxu0
      %v784 = vadd.f32 0.0, %v783
      %v785 = vpop.f32.mrf.mxu0
      %786 = vdwg.mxu0
      %787 = vmatpush.bf16.msra.mxu0 0
      %788 = vmatpush.bf16.msra.mxu0 0
      %789 = vmatpush.bf16.msra.mxu0 0
      %790 = vmatpush.bf16.msra.mxu0 0
      %791 = vmatpush.bf16.msra.mxu0 0
      %792 = vmatpush.bf16.msra.mxu0 0
      %793 = vmatpush.bf16.msra.mxu0 0
      %794 = vmatpush.bf16.msra.mxu0 %v769
      %795 = vmatmul.bf16.gmra.mxu0 %v763
      %v796 = vpop.f32.mrf.mxu0
      %v797 = vadd.f32 0.0, %v796
      %v798 = vpop.f32.mrf.mxu0
      %799 = vdwg.mxu0
      %800 = vmatpush.bf16.msra.mxu0 0
      %801 = vmatpush.bf16.msra.mxu0 0
      %802 = vmatpush.bf16.msra.mxu0 0
      %803 = vmatpush.bf16.msra.mxu0 0
      %804 = vmatpush.bf16.msra.mxu0 0
      %805 = vmatpush.bf16.msra.mxu0 0
      %806 = vmatpush.bf16.msra.mxu0 0
      %807 = vmatpush.bf16.msra.mxu0 %v772
      %808 = vmatmul.bf16.gmra.mxu0 %v763
      %v809 = vpop.f32.mrf.mxu0
      %v810 = vadd.f32 0.0, %v809
      %v811 = vpop.f32.mrf.mxu0
      %812 = vdwg.mxu0
      %v813 = vadd.f32 %v748, %v784
      %v814 = vadd.f32 %v749, %v797
      %v815 = vadd.f32 %v750, %v810
      %s816 = scalar_lea.vmem %s1, 32
      %v817 = vld [vmem:[%s816] sm:$0xf]
      %818 = vrot.lane.b32.xlu0 %v310, 90
      %v819 = vpop.permute.xlu0 %818
      %820 = vrot.lane.b32.xlu0 %v311, 90
      %v821 = vpop.permute.xlu0 %820
      %822 = vrot.lane.b32.xlu0 %v312, 90
      %v823 = vpop.permute.xlu0 %822
      %vm824 = vcmask 736256
      %v825 = vsel %vm824, %v819, %v821
      %v826 = vsel %vm824, %v821, %v823
      %v828 = vsel %vm322, %v817, 0
      %v831 = vsel %vm326, %v825, 0
      %v834 = vsel %vm326, %v826, 0
      %v837 = vsel %vm326, %v823, 0
      %839 = vmatpush.bf16.msra.mxu0 0
      %840 = vmatpush.bf16.msra.mxu0 0
      %841 = vmatpush.bf16.msra.mxu0 0
      %842 = vmatpush.bf16.msra.mxu0 0
      %843 = vmatpush.bf16.msra.mxu0 0
      %844 = vmatpush.bf16.msra.mxu0 0
      %845 = vmatpush.bf16.msra.mxu0 0
      %846 = vmatpush.bf16.msra.mxu0 %v831
      %847 = vmatmul.bf16.gmra.mxu0 %v828
      %v848 = vpop.f32.mrf.mxu0
      %v849 = vadd.f32 0.0, %v848
      %v850 = vpop.f32.mrf.mxu0
      %851 = vdwg.mxu0
      %852 = vmatpush.bf16.msra.mxu0 0
      %853 = vmatpush.bf16.msra.mxu0 0
      %854 = vmatpush.bf16.msra.mxu0 0
      %855 = vmatpush.bf16.msra.mxu0 0
      %856 = vmatpush.bf16.msra.mxu0 0
      %857 = vmatpush.bf16.msra.mxu0 0
      %858 = vmatpush.bf16.msra.mxu0 0
      %859 = vmatpush.bf16.msra.mxu0 %v834
      %860 = vmatmul.bf16.gmra.mxu0 %v828
      %v861 = vpop.f32.mrf.mxu0
      %v862 = vadd.f32 0.0, %v861
      %v863 = vpop.f32.mrf.mxu0
      %864 = vdwg.mxu0
      %865 = vmatpush.bf16.msra.mxu0 0
      %866 = vmatpush.bf16.msra.mxu0 0
      %867 = vmatpush.bf16.msra.mxu0 0
      %868 = vmatpush.bf16.msra.mxu0 0
      %869 = vmatpush.bf16.msra.mxu0 0
      %870 = vmatpush.bf16.msra.mxu0 0
      %871 = vmatpush.bf16.msra.mxu0 0
      %872 = vmatpush.bf16.msra.mxu0 %v837
      %873 = vmatmul.bf16.gmra.mxu0 %v828
      %v874 = vpop.f32.mrf.mxu0
      %v875 = vadd.f32 0.0, %v874
      %v876 = vpop.f32.mrf.mxu0
      %877 = vdwg.mxu0
      %v878 = vadd.f32 %v813, %v849
      %v879 = vadd.f32 %v814, %v862
      %v880 = vadd.f32 %v815, %v875
      %v881 = vpack.c.bf16 %v879, %v878
      %v882 = vpack.c.bf16 %v880, %v880
      %883 = vst [vmem:[%s283] sm:$0xff] %v881
      %vm884 = vcmask 257024
      %885 = vst.msk [vmem:[%s283 + $0x8] sm:$0xf] %vm884, %v882
      %v886 = vld [vmem:[%s2] sm:$0x7]
      %v888 = vperm.slane %v886, 0
      %v889 = vperm.slane %v886, 1
      %v890 = vperm.slane %v886, 2
      %v894 = vmul.f32 %v878, %v888
      %v895 = vmul.f32 %v879, %v889
      %v896 = vmul.f32 %v880, %v890
      %v897 = vadd.f32 %v894, %v895
      %vm898 = vcmask 261120
      %v899 = vsel %vm898, %v896, 0.0
      %v900 = vadd.f32 %v897, %v899
      %901 = vadd.xlane.f32.xlu0 %v900
      %v902 = vpop.xlane.xlu0 %901
      %vm903 = vcmask 7168
      %904 = vst.msk [vmem:[%s291] sm:$0xff] %vm903, %v902
      %v905 = vmul.f32 %v894, %v878
      %v906 = vmul.f32 %v895, %v879
      %v907 = vmul.f32 %v896, %v880
      %v908 = vadd.f32 %v905, %v906
      %v909 = vsel %vm898, %v907, 0.0
      %v910 = vadd.f32 %v908, %v909
      %911 = vadd.xlane.f32.xlu0 %v910
      %v912 = vpop.xlane.xlu0 %911
      %913 = vst.msk [vmem:[%s298] sm:$0xff] %vm903, %v912
      %s914 = smul.u32 3, %s22
      %p915 = scmp.lt.s32.totalorder %s21, 1
      %s916 = scalar_select %p915, %s21, 1
      %p917 = scmp.lt.s32.totalorder %s914, 2
      %s918 = scalar_select %p917, %s914, 2
      %s919 = smul.addr %s916, 3
      %s920 = sadd.s32 %s918, %s919
      %s921 = smul.addr %s920, 4
      %s922 = scalar_lea.vmem %s3, %s921
      %p923 = scmp.lt.s32.totalorder %s21, 1
      %s924 = scalar_select %p923, %s21, 1
      %p925 = scmp.lt.s32.totalorder %s22, 0
      %s926 = scalar_select %p925, %s22, 0
      %s927 = sadd.s32 %s926, %s924
      %s928 = smul.addr %s927, 8
      %s929 = scalar_lea.vmem %s4, %s928
      %p930 = scmp.lt.s32.totalorder %s21, 1
      %s931 = scalar_select %p930, %s21, 1
      %p932 = scmp.lt.s32.totalorder %s22, 0
      %s933 = scalar_select %p932, %s22, 0
      %s934 = sadd.s32 %s933, %s931
      %s935 = smul.addr %s934, 8
      %s936 = scalar_lea.vmem %s5, %s935
      // Predicated region
      $region33: #{conv_block_forward.6} parent=31 // pred_check
        %p937 = pneg %p119
      $region34: #{conv_block_forward.6} parent=31 // pred_check_branch
        %939 = sbr.rel (%p937) target = $region36
      $region35: #{conv_block_forward.6} parent=31 // pred_region
        %s940 = smul.u32 3, %s22
      $region36: #{conv_block_forward.6} parent=31 // pred_fallthru
        _
      // Predicated region
      $region37: #{conv_block_forward.6} parent=31 // pred_check
        %p941 = pneg %p147
      $region38: #{conv_block_forward.6} parent=31 // pred_check_branch
        %943 = sbr.rel (%p941) target = $region40
      $region39: #{conv_block_forward.6} parent=31 // pred_region
        _
      $region40: #{conv_block_forward.6} parent=31 // pred_fallthru
        _
      // Predicated region
      $region41: #{conv_block_forward.6} parent=31 // pred_check
        %p944 = pneg %p175
      $region42: #{conv_block_forward.6} parent=31 // pred_check_branch
        %946 = sbr.rel (%p944) target = $region44
      $region43: #{conv_block_forward.6} parent=31 // pred_region
        _
      $region44: #{conv_block_forward.6} parent=31 // pred_fallthru
        _
    $region32: #{conv_block_forward.6} parent=5 // pred_fallthru
      _
    %p947 = scmp.le.s32.totalorder 2, %s12
    // Predicated region
    $region45: #{conv_block_forward.6} parent=5 // pred_check
      %p948 = pneg %p947
    $region46: #{conv_block_forward.6} parent=5 // pred_check_branch
      %950 = sbr.rel (%p948) target = $region48
    $region47: #{conv_block_forward.6} parent=5 // pred_region
      %s951 = ssub.s32 %s12, 2
      // Predicated region
      $region49: #{conv_block_forward.6} parent=47 // pred_check
        %p952 = pneg %p125
      $region50: #{conv_block_forward.6} parent=47 // pred_check_branch
        %954 = sbr.rel (%p952) target = $region52
      $region51: #{conv_block_forward.6} parent=47 // pred_region
        %s955 = smul.u32 3, %s24
        %p956 = scmp.lt.s32.totalorder %s23, 1
        %s957 = scalar_select %p956, %s23, 1
        %p958 = scmp.lt.s32.totalorder %s955, 2
        %s959 = scalar_select %p958, %s955, 2
        %s960 = smul.addr %s957, 3
        %s961 = sadd.s32 %s959, %s960
        %s962 = smul.addr %s961, 4
        %s963 = scalar_lea.vmem %s3, %s962
      $region52: #{conv_block_forward.6} parent=47 // pred_fallthru
        _
      // Predicated region
      $region53: #{conv_block_forward.6} parent=47 // pred_check
        %p964 = pneg %p153
      $region54: #{conv_block_forward.6} parent=47 // pred_check_branch
        %966 = sbr.rel (%p964) target = $region56
      $region55: #{conv_block_forward.6} parent=47 // pred_region
        %p967 = scmp.lt.s32.totalorder %s23, 1
        %s968 = scalar_select %p967, %s23, 1
        %p969 = scmp.lt.s32.totalorder %s24, 0
        %s970 = scalar_select %p969, %s24, 0
        %s971 = sadd.s32 %s970, %s968
        %s972 = smul.addr %s971, 8
        %s973 = scalar_lea.vmem %s4, %s972
      $region56: #{conv_block_forward.6} parent=47 // pred_fallthru
        _
      // Predicated region
      $region57: #{conv_block_forward.6} parent=47 // pred_check
        %p974 = pneg %p181
      $region58: #{conv_block_forward.6} parent=47 // pred_check_branch
        %976 = sbr.rel (%p974) target = $region60
      $region59: #{conv_block_forward.6} parent=47 // pred_region
        %p977 = scmp.lt.s32.totalorder %s23, 1
        %s978 = scalar_select %p977, %s23, 1
        %p979 = scmp.lt.s32.totalorder %s24, 0
        %s980 = scalar_select %p979, %s24, 0
        %s981 = sadd.s32 %s980, %s978
        %s982 = smul.addr %s981, 8
        %s983 = scalar_lea.vmem %s5, %s982
      $region60: #{conv_block_forward.6} parent=47 // pred_fallthru
        _
    $region48: #{conv_block_forward.6} parent=5 // pred_fallthru
      _
  $region6: #{conv_block_forward.6} parent=0 // loop_footer
    %s16 = sadd.s32 1, %s12
  $region7: #{conv_block_forward.6} parent=0 // loop_footer_branch
    %11 = sbr.rel target = $region3
  $region8: #{conv_block_forward.6} parent=0 // loop_exit
    _

</llo_original>
